<compile_context>
chip_gen: v6e
topology: v6e:2x2x1
jax: 0.10.0
libtpu: 0.0.40
codegen_flags: <defaults>
</compile_context>

<pallas_src>
import math
from functools import lru_cache

import jax
import jax.numpy as jnp
from jax.experimental import pallas as pl
from jax.experimental.pallas import tpu as pltpu

EPS = 1e-5  # torch.nn.LayerNorm default


def _layernorm(x, g, b):
    mu = jnp.mean(x, axis=-1, keepdims=True)
    var = jnp.mean(jnp.square(x - mu), axis=-1, keepdims=True)
    return (x - mu) * jax.lax.rsqrt(var + EPS) * g + b


# --------------------------------------------------------------------------
# Fused kernel body: one (batch-tile, layer) grid step per invocation
# --------------------------------------------------------------------------
def _make_kernel(S, D, H, V):
    def kernel(x_ref, pe_ref,
               wqkv_ref, bqkv_ref, wo_ref, bo_ref, ln1g_ref, ln1b_ref,
               w1_ref, b1_ref, w2_ref, b2_ref, ln2g_ref, ln2b_ref,
               wout_ref, bout_ref,
               out_ref, x_scr):
        l = pl.program_id(1)
        cdt = wqkv_ref.dtype  # matmul operand dtype (f32 default, bf16 opt-in)

        # First layer for this batch tile: init the VMEM-resident activation
        # with embedding + sinusoidal positional encoding ((S, D), no B-copy).
        @pl.when(l == 0)
        def _():
            x_scr[...] = (x_ref[0].astype(jnp.float32)
                          + pe_ref[...].astype(jnp.float32))

        x = x_scr[...]

        # ---- single-head self-attention; 1/sqrt(D) folded into wq/bq --------
        qkv = jnp.dot(x.astype(cdt), wqkv_ref[0],
                      preferred_element_type=jnp.float32) + bqkv_ref[0]
        q, k, v = qkv[:, :D], qkv[:, D:2 * D], qkv[:, 2 * D:]

        # scores: contract last dims directly (no transposed copy of k)
        s = jax.lax.dot_general(q.astype(cdt), k.astype(cdt),
                                dimension_numbers=(((1,), (1,)), ((), ())),
                                preferred_element_type=jnp.float32)
        # TODO(synk): add a causal mask here if the reference TransformerBlock
        # uses masked self-attention (its definition is not provided).
        s = s - jnp.max(s, axis=-1, keepdims=True)
        p = jnp.exp(s)
        p = p / jnp.sum(p, axis=-1, keepdims=True)   # exact divide: fp32 parity

        attn = jnp.dot(p.astype(cdt), v.astype(cdt),
                       preferred_element_type=jnp.float32)
        attn = jnp.dot(attn.astype(cdt), wo_ref[0],
                       preferred_element_type=jnp.float32) + bo_ref[0]
        x = _layernorm(x + attn, ln1g_ref[0], ln1b_ref[0])

        # ---- feed-forward ----------------------------------------------------
        h = jnp.maximum(
            jnp.dot(x.astype(cdt), w1_ref[0],
                    preferred_element_type=jnp.float32) + b1_ref[0], 0.0)
        ff = jnp.dot(h.astype(cdt), w2_ref[0],
                     preferred_element_type=jnp.float32) + b2_ref[0]
        x = _layernorm(x + ff, ln2g_ref[0], ln2b_ref[0])

        x_scr[...] = x

        # Last layer: output projection; lane-dense (S, V) full-tile store.
        @pl.when(l == pl.num_programs(1) - 1)
        def _():
            out_ref[0] = (
                jnp.dot(x.astype(cdt), wout_ref[...],
                        preferred_element_type=jnp.float32) + bout_ref[...]
            ).astype(out_ref.dtype)

    return kernel


_LAYER_ARRAYS = ("wqkv", "bqkv", "wo", "bo", "ln1g", "ln1b",
                 "w1", "b1", "w2", "b2", "ln2g", "ln2b")


def fused_llm(x, pe, blocks, w_out, b_out):
    """Whole model body in one pallas_call.  x: (B, S, D) emb, pe: (S, D)."""
    B, S, D = x.shape
    L = blocks["wqkv"].shape[0]
    H = blocks["w1"].shape[-1]
    V = w_out.shape[-1]

    kernel = _make_kernel(S, D, H, V)

    layer_args = [blocks[n] for n in _LAYER_ARRAYS]
    args = [x, pe] + layer_args + [w_out, b_out]

    def layer_spec(a):
        # one layer's slab per grid step; streamed / double-buffered over l
        return pl.BlockSpec((1,) + a.shape[1:],
                            lambda b, l: (l,) + (0,) * (a.ndim - 1))

    in_specs = (
        [pl.BlockSpec((1, S, D), lambda b, l: (b, 0, 0)),   # per-batch activations
         pl.BlockSpec((S, D), lambda b, l: (0, 0))]          # PE table (resident)
        + [layer_spec(a) for a in layer_args]
        + [pl.BlockSpec((D, V), lambda b, l: (0, 0)),        # output proj (resident)
           pl.BlockSpec((1, V), lambda b, l: (0, 0))]
    )
    out_spec = pl.BlockSpec((1, S, V), lambda b, l: (b, 0, 0))

    # Explicit VMEM budget: 2x (one layer's weight blocks + activation block)
    # for double-buffering, plus resident arrays, scratch and headroom.
    layer_block_bytes = sum(math.prod(a.shape[1:]) * a.dtype.itemsize
                            for a in layer_args)
    fixed_bytes = (S * D * x.dtype.itemsize            # x block
                   + S * D * pe.dtype.itemsize         # PE
                   + D * V * w_out.dtype.itemsize + V * b_out.dtype.itemsize
                   + S * V * 4                         # out block
                   + S * D * 4)                        # activation scratch
    vmem_limit = int(min(max(2 * (layer_block_bytes + S * D * x.dtype.itemsize)
                             + 2 * fixed_bytes + (4 << 20), 16 << 20), 64 << 20))

    # advisory cost hint for XLA scheduling of the surrounding glue ops
    M = B * S
    flops = int(L * (2 * M * D * 3 * D + 2 * M * D * D + 2 * M * D * H
                     + 2 * M * H * D + 4 * B * S * S * D) + 2 * M * D * V)
    transcendentals = int(L * (B * S * S + 2 * M))
    bytes_accessed = int(B * layer_block_bytes * L
                         + sum(a.size * a.dtype.itemsize
                               for a in (x, pe, w_out, b_out))
                         + M * V * 4)

    return pl.pallas_call(
        kernel,
        out_shape=jax.ShapeDtypeStruct((B, S, V), jnp.float32),
        grid_spec=pltpu.PrefetchScalarGridSpec(
            num_scalar_prefetch=0,
            grid=(B, L),                                 # batch parallel, layers serial
            in_specs=in_specs,
            out_specs=out_spec,
            scratch_shapes=[pltpu.VMEM((S, D), jnp.float32)],
        ),
        compiler_params=pltpu.CompilerParams(
            dimension_semantics=("parallel", "arbitrary"),
            vmem_limit_bytes=vmem_limit),
        cost_estimate=pl.CostEstimate(flops=flops,
                                      transcendentals=transcendentals,
                                      bytes_accessed=bytes_accessed),
    )(*args)


# --------------------------------------------------------------------------
# Glue: embedding gather, cached PE table, parameter init, full forward
# --------------------------------------------------------------------------
@lru_cache(maxsize=None)
def sinusoidal_pe(seq_len, d_model):
    assert d_model % 2 == 0, "sinusoidal PE assumes even embedding_dim"
    pos = jnp.arange(seq_len, dtype=jnp.float32)[:, None]
    i = jnp.arange(0, d_model, 2, dtype=jnp.float32)[None, :]
    div = jnp.exp(-(math.log(10000.0)) * i / d_model)
    pe = jnp.zeros((seq_len, d_model), jnp.float32)
    pe = pe.at[:, 0::2].set(jnp.sin(pos * div))
    pe = pe.at[:, 1::2].set(jnp.cos(pos * div))
    return pe


def init_params(key, vocab_size, embedding_dim, hidden_dim, num_layers,
                matmul_dtype=jnp.float32):
    """matmul_dtype=jnp.bfloat16 is an opt-in MXU speed knob (f32 accumulate)."""
    D, H, V, L = embedding_dim, hidden_dim, vocab_size, num_layers
    scale = 1.0 / math.sqrt(D)
    ks = jax.random.split(key, 8)

    def dense(k, shape):
        return 0.02 * jax.random.normal(k, shape, jnp.float32)

    # Fused QKV projection; 1/sqrt(D) attention scale folded into wq (and would
    # be folded into bq when importing real torch weights).
    wq = dense(ks[0], (L, D, D)) * scale
    wk = dense(ks[1], (L, D, D))
    wv = dense(ks[2], (L, D, D))
    wqkv = jnp.concatenate([wq, wk, wv], axis=-1)          # (L, D, 3D)

    def cast(a):
        return a.astype(matmul_dtype)

    blocks = {
        "wqkv": cast(wqkv), "bqkv": jnp.zeros((L, 1, 3 * D), jnp.float32),
        "wo": cast(dense(ks[3], (L, D, D))), "bo": jnp.zeros((L, 1, D), jnp.float32),
        "ln1g": jnp.ones((L, 1, D), jnp.float32),
        "ln1b": jnp.zeros((L, 1, D), jnp.float32),
        "w1": cast(dense(ks[4], (L, D, H))), "b1": jnp.zeros((L, 1, H), jnp.float32),
        "w2": cast(dense(ks[5], (L, H, D))), "b2": jnp.zeros((L, 1, D), jnp.float32),
        "ln2g": jnp.ones((L, 1, D), jnp.float32),
        "ln2b": jnp.zeros((L, 1, D), jnp.float32),
    }
    return {
        "embedding": 0.02 * jax.random.normal(ks[6], (V, D), jnp.float32),
        "w_out": cast(dense(ks[7], (D, V))),
        "b_out": jnp.zeros((1, V), jnp.float32),
        "blocks": blocks,
    }


def simple_llm_forward(tokens, params):
    # embedding lookup (data-dependent gather) -- plain JAX glue
    emb = params["embedding"][tokens]            # (B, S, D) float32
    B, S, D = emb.shape
    # transpose(0,1) -> PE over seq -> transpose back == add pe[s,:] to x[b,s,:]
    pe = sinusoidal_pe(S, D)                     # (S, D) cached constant
    return fused_llm(emb, pe, params["blocks"],
                     params["w_out"], params["b_out"])    # (B, S, vocab)


if __name__ == "__main__":
    vocab_size, embedding_dim, hidden_dim, num_layers = 128, 32, 64, 2
    batch, seq = 2, 8

    key = jax.random.PRNGKey(0)
    k_tok, k_params = jax.random.split(key)
    tokens = jax.random.randint(k_tok, (batch, seq), 0, vocab_size, dtype=jnp.int32)
    params = init_params(k_params, vocab_size, embedding_dim, hidden_dim, num_layers)

    logits = simple_llm_forward(tokens, params)
    jax.block_until_ready(logits)
    assert logits.shape == (batch, seq, vocab_size)
    assert bool(jnp.all(jnp.isfinite(logits)))
    print("KERNEL_OK")
</pallas_src>

<mosaic_0001>
module attributes {stable_mosaic.version = 11 : i64} {
  func.func @kernel(%arg0: i32, %arg1: i32, %arg2: memref<1x8x32xf32, #tpu.memory_space<vmem>>, %arg3: memref<8x32xf32, #tpu.memory_space<vmem>>, %arg4: memref<1x32x96xf32, #tpu.memory_space<vmem>>, %arg5: memref<1x1x96xf32, #tpu.memory_space<vmem>>, %arg6: memref<1x32x32xf32, #tpu.memory_space<vmem>>, %arg7: memref<1x1x32xf32, #tpu.memory_space<vmem>>, %arg8: memref<1x1x32xf32, #tpu.memory_space<vmem>>, %arg9: memref<1x1x32xf32, #tpu.memory_space<vmem>>, %arg10: memref<1x32x64xf32, #tpu.memory_space<vmem>>, %arg11: memref<1x1x64xf32, #tpu.memory_space<vmem>>, %arg12: memref<1x64x32xf32, #tpu.memory_space<vmem>>, %arg13: memref<1x1x32xf32, #tpu.memory_space<vmem>>, %arg14: memref<1x1x32xf32, #tpu.memory_space<vmem>>, %arg15: memref<1x1x32xf32, #tpu.memory_space<vmem>>, %arg16: memref<32x128xf32, #tpu.memory_space<vmem>>, %arg17: memref<1x128xf32, #tpu.memory_space<vmem>>, %arg18: memref<1x8x128xf32, #tpu.memory_space<vmem>>, %arg19: memref<8x32xf32, #tpu.memory_space<vmem>>) attributes {dimension_semantics = [#tpu.dimension_semantics<parallel>, #tpu.dimension_semantics<arbitrary>], iteration_bounds = array<i64: 2, 2>, scalar_prefetch = 0 : i64, scratch_operands = 1 : i64, tpu.core_type = #tpu.core_type<tc>, window_params = [{transform_indices = @transform_0, window_bounds = array<i64: 1, 8, 32>}, {pipeline_mode = #tpu.pipeline_mode<synchronous>, transform_indices = @transform_1, window_bounds = array<i64: 8, 32>}, {transform_indices = @transform_2, window_bounds = array<i64: 1, 32, 96>}, {transform_indices = @transform_3, window_bounds = array<i64: 1, 1, 96>}, {transform_indices = @transform_4, window_bounds = array<i64: 1, 32, 32>}, {transform_indices = @transform_5, window_bounds = array<i64: 1, 1, 32>}, {transform_indices = @transform_6, window_bounds = array<i64: 1, 1, 32>}, {transform_indices = @transform_7, window_bounds = array<i64: 1, 1, 32>}, {transform_indices = @transform_8, window_bounds = array<i64: 1, 32, 64>}, {transform_indices = @transform_9, window_bounds = array<i64: 1, 1, 64>}, {transform_indices = @transform_10, window_bounds = array<i64: 1, 64, 32>}, {transform_indices = @transform_11, window_bounds = array<i64: 1, 1, 32>}, {transform_indices = @transform_12, window_bounds = array<i64: 1, 1, 32>}, {transform_indices = @transform_13, window_bounds = array<i64: 1, 1, 32>}, {pipeline_mode = #tpu.pipeline_mode<synchronous>, transform_indices = @transform_14, window_bounds = array<i64: 32, 128>}, {pipeline_mode = #tpu.pipeline_mode<synchronous>, transform_indices = @transform_15, window_bounds = array<i64: 1, 128>}, {transform_indices = @transform_16, window_bounds = array<i64: 1, 8, 128>}]} {
    %c0_i32 = arith.constant 0 : i32
    %0 = arith.cmpi eq, %arg1, %c0_i32 : i32
    %1 = arith.extui %0 : i1 to i32
    %c0_i32_0 = arith.constant 0 : i32
    %2 = arith.cmpi ne, %1, %c0_i32_0 : i32
    scf.if %2 {
      %c0_59 = arith.constant 0 : index
      %c0_60 = arith.constant 0 : index
      %c0_61 = arith.constant 0 : index
      %106 = vector.load %arg2[%c0_59, %c0_60, %c0_61] : memref<1x8x32xf32, #tpu.memory_space<vmem>>, vector<1x8x32xf32>
      %107 = vector.shape_cast %106 : vector<1x8x32xf32> to vector<8x32xf32>
      %c0_62 = arith.constant 0 : index
      %c0_63 = arith.constant 0 : index
      %108 = vector.load %arg3[%c0_62, %c0_63] : memref<8x32xf32, #tpu.memory_space<vmem>>, vector<8x32xf32>
      %109 = arith.addf %107, %108 : vector<8x32xf32>
      %c0_64 = arith.constant 0 : index
      %c0_65 = arith.constant 0 : index
      %110 = vector.load %arg19[%c0_64, %c0_65] : memref<8x32xf32, #tpu.memory_space<vmem>>, vector<8x32xf32>
      tpu.vector_store %arg19[%c0_64, %c0_65], %109 {strides = array<i32>} : memref<8x32xf32, #tpu.memory_space<vmem>>, vector<8x32xf32>,
    } else {
    }
    %c0 = arith.constant 0 : index
    %c0_1 = arith.constant 0 : index
    %3 = vector.load %arg19[%c0, %c0_1] : memref<8x32xf32, #tpu.memory_space<vmem>>, vector<8x32xf32>
    %c0_2 = arith.constant 0 : index
    %c0_3 = arith.constant 0 : index
    %c0_4 = arith.constant 0 : index
    %4 = vector.load %arg4[%c0_2, %c0_3, %c0_4] : memref<1x32x96xf32, #tpu.memory_space<vmem>>, vector<1x32x96xf32>
    %5 = vector.shape_cast %4 : vector<1x32x96xf32> to vector<32x96xf32>
    %cst = arith.constant dense<0.000000e+00> : vector<8x96xf32>
    %6 = tpu.matmul %3, %5, %cst {dimension_numbers = #tpu.dot_dimension_numbers<[1], [0], [0], [1], [0, 0, 1, 1], [], []>} : vector<8x32xf32>, vector<32x96xf32>, vector<8x96xf32> -> vector<8x96xf32>
    %c0_5 = arith.constant 0 : index
    %c0_6 = arith.constant 0 : index
    %c0_7 = arith.constant 0 : index
    %7 = vector.load %arg5[%c0_5, %c0_6, %c0_7] : memref<1x1x96xf32, #tpu.memory_space<vmem>>, vector<1x1x96xf32>
    %8 = vector.shape_cast %7 : vector<1x1x96xf32> to vector<1x96xf32>
    %9 = vector.broadcast %8 : vector<1x96xf32> to vector<8x96xf32>
    %10 = arith.addf %6, %9 : vector<8x96xf32>
    %11 = vector.extract_strided_slice %10 {offsets = [0, 0], sizes = [8, 32], strides = [1, 1]} : vector<8x96xf32> to vector<8x32xf32>
    %12 = vector.extract_strided_slice %10 {offsets = [0, 32], sizes = [8, 32], strides = [1, 1]} : vector<8x96xf32> to vector<8x32xf32>
    %13 = vector.extract_strided_slice %10 {offsets = [0, 64], sizes = [8, 32], strides = [1, 1]} : vector<8x96xf32> to vector<8x32xf32>
    %cst_8 = arith.constant dense<0.000000e+00> : vector<8x8xf32>
    %14 = tpu.matmul %11, %12, %cst_8 {dimension_numbers = #tpu.dot_dimension_numbers<[1], [1], [0], [0], [0, 0, 1, 0], [], []>} : vector<8x32xf32>, vector<8x32xf32>, vector<8x8xf32> -> vector<8x8xf32>
    %cst_9 = arith.constant dense<0xFF800000> : vector<8xf32>
    %15 = vector.multi_reduction <maximumf>, %14, %cst_9 [1] : vector<8x8xf32> to vector<8xf32>
    %16 = vector.shape_cast %15 : vector<8xf32> to vector<8x1xf32>
    %17 = vector.broadcast %16 : vector<8x1xf32> to vector<8x8xf32>
    %18 = arith.subf %14, %17 : vector<8x8xf32>
    %19 = math.exp %18 : vector<8x8xf32>
    %cst_10 = arith.constant dense<0.000000e+00> : vector<8xf32>
    %20 = vector.multi_reduction <add>, %19, %cst_10 [1] : vector<8x8xf32> to vector<8xf32>
    %21 = vector.shape_cast %20 : vector<8xf32> to vector<8x1xf32>
    %22 = vector.broadcast %21 : vector<8x1xf32> to vector<8x8xf32>
    %23 = arith.divf %19, %22 : vector<8x8xf32>
    %cst_11 = arith.constant dense<0.000000e+00> : vector<8x32xf32>
    %24 = tpu.matmul %23, %13, %cst_11 {dimension_numbers = #tpu.dot_dimension_numbers<[1], [0], [0], [1], [0, 0, 1, 1], [], []>} : vector<8x8xf32>, vector<8x32xf32>, vector<8x32xf32> -> vector<8x32xf32>
    %c0_12 = arith.constant 0 : index
    %c0_13 = arith.constant 0 : index
    %c0_14 = arith.constant 0 : index
    %25 = vector.load %arg6[%c0_12, %c0_13, %c0_14] : memref<1x32x32xf32, #tpu.memory_space<vmem>>, vector<1x32x32xf32>
    %26 = vector.shape_cast %25 : vector<1x32x32xf32> to vector<32x32xf32>
    %cst_15 = arith.constant dense<0.000000e+00> : vector<8x32xf32>
    %27 = tpu.matmul %24, %26, %cst_15 {dimension_numbers = #tpu.dot_dimension_numbers<[1], [0], [0], [1], [0, 0, 1, 1], [], []>} : vector<8x32xf32>, vector<32x32xf32>, vector<8x32xf32> -> vector<8x32xf32>
    %c0_16 = arith.constant 0 : index
    %c0_17 = arith.constant 0 : index
    %c0_18 = arith.constant 0 : index
    %28 = vector.load %arg7[%c0_16, %c0_17, %c0_18] : memref<1x1x32xf32, #tpu.memory_space<vmem>>, vector<1x1x32xf32>
    %29 = vector.shape_cast %28 : vector<1x1x32xf32> to vector<1x32xf32>
    %30 = vector.broadcast %29 : vector<1x32xf32> to vector<8x32xf32>
    %31 = arith.addf %27, %30 : vector<8x32xf32>
    %32 = arith.addf %3, %31 : vector<8x32xf32>
    %c0_19 = arith.constant 0 : index
    %c0_20 = arith.constant 0 : index
    %c0_21 = arith.constant 0 : index
    %33 = vector.load %arg8[%c0_19, %c0_20, %c0_21] : memref<1x1x32xf32, #tpu.memory_space<vmem>>, vector<1x1x32xf32>
    %34 = vector.shape_cast %33 : vector<1x1x32xf32> to vector<1x32xf32>
    %c0_22 = arith.constant 0 : index
    %c0_23 = arith.constant 0 : index
    %c0_24 = arith.constant 0 : index
    %35 = vector.load %arg9[%c0_22, %c0_23, %c0_24] : memref<1x1x32xf32, #tpu.memory_space<vmem>>, vector<1x1x32xf32>
    %36 = vector.shape_cast %35 : vector<1x1x32xf32> to vector<1x32xf32>
    %cst_25 = arith.constant dense<0.000000e+00> : vector<8xf32>
    %37 = vector.multi_reduction <add>, %32, %cst_25 [1] : vector<8x32xf32> to vector<8xf32>
    %38 = vector.shape_cast %37 : vector<8xf32> to vector<8x1xf32>
    %cst_26 = arith.constant 3.200000e+01 : f32
    %39 = vector.broadcast %cst_26 : f32 to vector<8x1xf32>
    %40 = arith.divf %38, %39 : vector<8x1xf32>
    %41 = vector.broadcast %40 : vector<8x1xf32> to vector<8x32xf32>
    %42 = arith.subf %32, %41 : vector<8x32xf32>
    %43 = arith.mulf %42, %42 : vector<8x32xf32>
    %cst_27 = arith.constant dense<0.000000e+00> : vector<8xf32>
    %44 = vector.multi_reduction <add>, %43, %cst_27 [1] : vector<8x32xf32> to vector<8xf32>
    %45 = vector.shape_cast %44 : vector<8xf32> to vector<8x1xf32>
    %cst_28 = arith.constant 3.200000e+01 : f32
    %46 = vector.broadcast %cst_28 : f32 to vector<8x1xf32>
    %47 = arith.divf %45, %46 : vector<8x1xf32>
    %48 = vector.broadcast %40 : vector<8x1xf32> to vector<8x32xf32>
    %49 = arith.subf %32, %48 : vector<8x32xf32>
    %cst_29 = arith.constant 9.99999974E-6 : f32
    %50 = vector.broadcast %cst_29 : f32 to vector<8x1xf32>
    %51 = arith.addf %47, %50 : vector<8x1xf32>
    %52 = math.rsqrt %51 : vector<8x1xf32>
    %53 = vector.broadcast %52 : vector<8x1xf32> to vector<8x32xf32>
    %54 = arith.mulf %49, %53 : vector<8x32xf32>
    %55 = vector.broadcast %34 : vector<1x32xf32> to vector<8x32xf32>
    %56 = arith.mulf %54, %55 : vector<8x32xf32>
    %57 = vector.broadcast %36 : vector<1x32xf32> to vector<8x32xf32>
    %58 = arith.addf %56, %57 : vector<8x32xf32>
    %c0_30 = arith.constant 0 : index
    %c0_31 = arith.constant 0 : index
    %c0_32 = arith.constant 0 : index
    %59 = vector.load %arg10[%c0_30, %c0_31, %c0_32] : memref<1x32x64xf32, #tpu.memory_space<vmem>>, vector<1x32x64xf32>
    %60 = vector.shape_cast %59 : vector<1x32x64xf32> to vector<32x64xf32>
    %cst_33 = arith.constant dense<0.000000e+00> : vector<8x64xf32>
    %61 = tpu.matmul %58, %60, %cst_33 {dimension_numbers = #tpu.dot_dimension_numbers<[1], [0], [0], [1], [0, 0, 1, 1], [], []>} : vector<8x32xf32>, vector<32x64xf32>, vector<8x64xf32> -> vector<8x64xf32>
    %c0_34 = arith.constant 0 : index
    %c0_35 = arith.constant 0 : index
    %c0_36 = arith.constant 0 : index
    %62 = vector.load %arg11[%c0_34, %c0_35, %c0_36] : memref<1x1x64xf32, #tpu.memory_space<vmem>>, vector<1x1x64xf32>
    %63 = vector.shape_cast %62 : vector<1x1x64xf32> to vector<1x64xf32>
    %64 = vector.broadcast %63 : vector<1x64xf32> to vector<8x64xf32>
    %65 = arith.addf %61, %64 : vector<8x64xf32>
    %cst_37 = arith.constant 0.000000e+00 : f32
    %66 = vector.broadcast %cst_37 : f32 to vector<8x64xf32>
    %67 = arith.maximumf %65, %66 : vector<8x64xf32>
    %c0_38 = arith.constant 0 : index
    %c0_39 = arith.constant 0 : index
    %c0_40 = arith.constant 0 : index
    %68 = vector.load %arg12[%c0_38, %c0_39, %c0_40] : memref<1x64x32xf32, #tpu.memory_space<vmem>>, vector<1x64x32xf32>
    %69 = vector.shape_cast %68 : vector<1x64x32xf32> to vector<64x32xf32>
    %cst_41 = arith.constant dense<0.000000e+00> : vector<8x32xf32>
    %70 = tpu.matmul %67, %69, %cst_41 {dimension_numbers = #tpu.dot_dimension_numbers<[1], [0], [0], [1], [0, 0, 1, 1], [], []>} : vector<8x64xf32>, vector<64x32xf32>, vector<8x32xf32> -> vector<8x32xf32>
    %c0_42 = arith.constant 0 : index
    %c0_43 = arith.constant 0 : index
    %c0_44 = arith.constant 0 : index
    %71 = vector.load %arg13[%c0_42, %c0_43, %c0_44] : memref<1x1x32xf32, #tpu.memory_space<vmem>>, vector<1x1x32xf32>
    %72 = vector.shape_cast %71 : vector<1x1x32xf32> to vector<1x32xf32>
    %73 = vector.broadcast %72 : vector<1x32xf32> to vector<8x32xf32>
    %74 = arith.addf %70, %73 : vector<8x32xf32>
    %75 = arith.addf %58, %74 : vector<8x32xf32>
    %c0_45 = arith.constant 0 : index
    %c0_46 = arith.constant 0 : index
    %c0_47 = arith.constant 0 : index
    %76 = vector.load %arg14[%c0_45, %c0_46, %c0_47] : memref<1x1x32xf32, #tpu.memory_space<vmem>>, vector<1x1x32xf32>
    %77 = vector.shape_cast %76 : vector<1x1x32xf32> to vector<1x32xf32>
    %c0_48 = arith.constant 0 : index
    %c0_49 = arith.constant 0 : index
    %c0_50 = arith.constant 0 : index
    %78 = vector.load %arg15[%c0_48, %c0_49, %c0_50] : memref<1x1x32xf32, #tpu.memory_space<vmem>>, vector<1x1x32xf32>
    %79 = vector.shape_cast %78 : vector<1x1x32xf32> to vector<1x32xf32>
    %cst_51 = arith.constant dense<0.000000e+00> : vector<8xf32>
    %80 = vector.multi_reduction <add>, %75, %cst_51 [1] : vector<8x32xf32> to vector<8xf32>
    %81 = vector.shape_cast %80 : vector<8xf32> to vector<8x1xf32>
    %cst_52 = arith.constant 3.200000e+01 : f32
    %82 = vector.broadcast %cst_52 : f32 to vector<8x1xf32>
    %83 = arith.divf %81, %82 : vector<8x1xf32>
    %84 = vector.broadcast %83 : vector<8x1xf32> to vector<8x32xf32>
    %85 = arith.subf %75, %84 : vector<8x32xf32>
    %86 = arith.mulf %85, %85 : vector<8x32xf32>
    %cst_53 = arith.constant dense<0.000000e+00> : vector<8xf32>
    %87 = vector.multi_reduction <add>, %86, %cst_53 [1] : vector<8x32xf32> to vector<8xf32>
    %88 = vector.shape_cast %87 : vector<8xf32> to vector<8x1xf32>
    %cst_54 = arith.constant 3.200000e+01 : f32
    %89 = vector.broadcast %cst_54 : f32 to vector<8x1xf32>
    %90 = arith.divf %88, %89 : vector<8x1xf32>
    %91 = vector.broadcast %83 : vector<8x1xf32> to vector<8x32xf32>
    %92 = arith.subf %75, %91 : vector<8x32xf32>
    %cst_55 = arith.constant 9.99999974E-6 : f32
    %93 = vector.broadcast %cst_55 : f32 to vector<8x1xf32>
    %94 = arith.addf %90, %93 : vector<8x1xf32>
    %95 = math.rsqrt %94 : vector<8x1xf32>
    %96 = vector.broadcast %95 : vector<8x1xf32> to vector<8x32xf32>
    %97 = arith.mulf %92, %96 : vector<8x32xf32>
    %98 = vector.broadcast %77 : vector<1x32xf32> to vector<8x32xf32>
    %99 = arith.mulf %97, %98 : vector<8x32xf32>
    %100 = vector.broadcast %79 : vector<1x32xf32> to vector<8x32xf32>
    %101 = arith.addf %99, %100 : vector<8x32xf32>
    %c0_56 = arith.constant 0 : index
    %c0_57 = arith.constant 0 : index
    %102 = vector.load %arg19[%c0_56, %c0_57] : memref<8x32xf32, #tpu.memory_space<vmem>>, vector<8x32xf32>
    tpu.vector_store %arg19[%c0_56, %c0_57], %101 {strides = array<i32>} : memref<8x32xf32, #tpu.memory_space<vmem>>, vector<8x32xf32>,
    %c1_i32 = arith.constant 1 : i32
    %103 = arith.cmpi eq, %arg1, %c1_i32 : i32
    %104 = arith.extui %103 : i1 to i32
    %c0_i32_58 = arith.constant 0 : i32
    %105 = arith.cmpi ne, %104, %c0_i32_58 : i32
    scf.if %105 {
      %c0_59 = arith.constant 0 : index
      %c0_60 = arith.constant 0 : index
      %106 = vector.load %arg16[%c0_59, %c0_60] : memref<32x128xf32, #tpu.memory_space<vmem>>, vector<32x128xf32>
      %cst_61 = arith.constant dense<0.000000e+00> : vector<8x128xf32>
      %107 = tpu.matmul %101, %106, %cst_61 {dimension_numbers = #tpu.dot_dimension_numbers<[1], [0], [0], [1], [0, 0, 1, 1], [], []>} : vector<8x32xf32>, vector<32x128xf32>, vector<8x128xf32> -> vector<8x128xf32>
      %c0_62 = arith.constant 0 : index
      %c0_63 = arith.constant 0 : index
      %108 = vector.load %arg17[%c0_62, %c0_63] : memref<1x128xf32, #tpu.memory_space<vmem>>, vector<1x128xf32>
      %109 = vector.broadcast %108 : vector<1x128xf32> to vector<8x128xf32>
      %110 = arith.addf %107, %109 : vector<8x128xf32>
      %c0_64 = arith.constant 0 : index
      %c0_65 = arith.constant 0 : index
      %c0_66 = arith.constant 0 : index
      %111 = vector.load %arg18[%c0_64, %c0_65, %c0_66] : memref<1x8x128xf32, #tpu.memory_space<vmem>>, vector<1x8x128xf32>
      %112 = vector.shape_cast %111 : vector<1x8x128xf32> to vector<8x128xf32>
      %113 = vector.shape_cast %110 : vector<8x128xf32> to vector<1x8x128xf32>
      tpu.vector_store %arg18[%c0_64, %c0_65, %c0_66], %113 {strides = array<i32>} : memref<1x8x128xf32, #tpu.memory_space<vmem>>, vector<1x8x128xf32>,
    } else {
    }
    return
  }
  func.func @transform_0(%arg0: i32, %arg1: i32) -> (i32, i32, i32) {
    %c0_i32 = arith.constant 0 : i32
    %c0_i32_0 = arith.constant 0 : i32
    %c0_i32_1 = arith.constant 0 : i32
    return %arg0, %c0_i32, %c0_i32_0 : i32, i32, i32
  }
  func.func @transform_1(%arg0: i32, %arg1: i32) -> (i32, i32) {
    %c0_i32 = arith.constant 0 : i32
    %c0_i32_0 = arith.constant 0 : i32
    %c0_i32_1 = arith.constant 0 : i32
    return %c0_i32, %c0_i32_0 : i32, i32
  }
  func.func @transform_2(%arg0: i32, %arg1: i32) -> (i32, i32, i32) {
    %c0_i32 = arith.constant 0 : i32
    %c0_i32_0 = arith.constant 0 : i32
    %c0_i32_1 = arith.constant 0 : i32
    return %arg1, %c0_i32, %c0_i32_0 : i32, i32, i32
  }
  func.func @transform_3(%arg0: i32, %arg1: i32) -> (i32, i32, i32) {
    %c0_i32 = arith.constant 0 : i32
    %c0_i32_0 = arith.constant 0 : i32
    %c0_i32_1 = arith.constant 0 : i32
    return %arg1, %c0_i32, %c0_i32_0 : i32, i32, i32
  }
  func.func @transform_4(%arg0: i32, %arg1: i32) -> (i32, i32, i32) {
    %c0_i32 = arith.constant 0 : i32
    %c0_i32_0 = arith.constant 0 : i32
    %c0_i32_1 = arith.constant 0 : i32
    return %arg1, %c0_i32, %c0_i32_0 : i32, i32, i32
  }
  func.func @transform_5(%arg0: i32, %arg1: i32) -> (i32, i32, i32) {
    %c0_i32 = arith.constant 0 : i32
    %c0_i32_0 = arith.constant 0 : i32
    %c0_i32_1 = arith.constant 0 : i32
    return %arg1, %c0_i32, %c0_i32_0 : i32, i32, i32
  }
  func.func @transform_6(%arg0: i32, %arg1: i32) -> (i32, i32, i32) {
    %c0_i32 = arith.constant 0 : i32
    %c0_i32_0 = arith.constant 0 : i32
    %c0_i32_1 = arith.constant 0 : i32
    return %arg1, %c0_i32, %c0_i32_0 : i32, i32, i32
  }
  func.func @transform_7(%arg0: i32, %arg1: i32) -> (i32, i32, i32) {
    %c0_i32 = arith.constant 0 : i32
    %c0_i32_0 = arith.constant 0 : i32
    %c0_i32_1 = arith.constant 0 : i32
    return %arg1, %c0_i32, %c0_i32_0 : i32, i32, i32
  }
  func.func @transform_8(%arg0: i32, %arg1: i32) -> (i32, i32, i32) {
    %c0_i32 = arith.constant 0 : i32
    %c0_i32_0 = arith.constant 0 : i32
    %c0_i32_1 = arith.constant 0 : i32
    return %arg1, %c0_i32, %c0_i32_0 : i32, i32, i32
  }
  func.func @transform_9(%arg0: i32, %arg1: i32) -> (i32, i32, i32) {
    %c0_i32 = arith.constant 0 : i32
    %c0_i32_0 = arith.constant 0 : i32
    %c0_i32_1 = arith.constant 0 : i32
    return %arg1, %c0_i32, %c0_i32_0 : i32, i32, i32
  }
  func.func @transform_10(%arg0: i32, %arg1: i32) -> (i32, i32, i32) {
    %c0_i32 = arith.constant 0 : i32
    %c0_i32_0 = arith.constant 0 : i32
    %c0_i32_1 = arith.constant 0 : i32
    return %arg1, %c0_i32, %c0_i32_0 : i32, i32, i32
  }
  func.func @transform_11(%arg0: i32, %arg1: i32) -> (i32, i32, i32) {
    %c0_i32 = arith.constant 0 : i32
    %c0_i32_0 = arith.constant 0 : i32
    %c0_i32_1 = arith.constant 0 : i32
    return %arg1, %c0_i32, %c0_i32_0 : i32, i32, i32
  }
  func.func @transform_12(%arg0: i32, %arg1: i32) -> (i32, i32, i32) {
    %c0_i32 = arith.constant 0 : i32
    %c0_i32_0 = arith.constant 0 : i32
    %c0_i32_1 = arith.constant 0 : i32
    return %arg1, %c0_i32, %c0_i32_0 : i32, i32, i32
  }
  func.func @transform_13(%arg0: i32, %arg1: i32) -> (i32, i32, i32) {
    %c0_i32 = arith.constant 0 : i32
    %c0_i32_0 = arith.constant 0 : i32
    %c0_i32_1 = arith.constant 0 : i32
    return %arg1, %c0_i32, %c0_i32_0 : i32, i32, i32
  }
  func.func @transform_14(%arg0: i32, %arg1: i32) -> (i32, i32) {
    %c0_i32 = arith.constant 0 : i32
    %c0_i32_0 = arith.constant 0 : i32
    %c0_i32_1 = arith.constant 0 : i32
    return %c0_i32, %c0_i32_0 : i32, i32
  }
  func.func @transform_15(%arg0: i32, %arg1: i32) -> (i32, i32) {
    %c0_i32 = arith.constant 0 : i32
    %c0_i32_0 = arith.constant 0 : i32
    %c0_i32_1 = arith.constant 0 : i32
    return %c0_i32, %c0_i32_0 : i32, i32
  }
  func.func @transform_16(%arg0: i32, %arg1: i32) -> (i32, i32, i32) {
    %c0_i32 = arith.constant 0 : i32
    %c0_i32_0 = arith.constant 0 : i32
    %c0_i32_1 = arith.constant 0 : i32
    return %arg0, %c0_i32, %c0_i32_0 : i32, i32, i32
  }
}

</mosaic_0001>

<llo_original>
// kernel: tpu_custom_call.1
$region0: #{tpu_custom_call.1}
  #allocation0 [shape = 'u32[]', space=smem, size = 0x4, offset = 0x4, fixed_abs, tag = 'smem constant byte address 0x4 - core index']
  #allocation1 [shape = 'u32[144,128]{1,0:T(1,128)}', space=vmem, size = 0x12000, scoped, tag = 'internal scratch']
  #allocation2 [shape = 'f32[8,32]{1,0:T(8,128)}', space=vmem, size = 0x1000, scoped, tag = 'scratch operand']
  %s0 = inlined_call_operand.hbm [shape: f32[2,8,32], index: 0, kind: input, shape index: {}]
  %s1 = inlined_call_operand.hbm [shape: f32[8,32], index: 1, kind: input, shape index: {}]
  %s2 = inlined_call_operand.vmem [shape: f32[2,32,96], index: 2, kind: input, shape index: {}]
  %s3 = inlined_call_operand.vmem [shape: f32[2,1,96], index: 3, kind: input, shape index: {}]
  %s4 = inlined_call_operand.vmem [shape: f32[2,32,32], index: 4, kind: input, shape index: {}]
  %s5 = inlined_call_operand.vmem [shape: f32[2,1,32], index: 5, kind: input, shape index: {}]
  %s6 = inlined_call_operand.vmem [shape: f32[2,1,32], index: 6, kind: input, shape index: {}]
  %s7 = inlined_call_operand.vmem [shape: f32[2,1,32], index: 7, kind: input, shape index: {}]
  %s8 = inlined_call_operand.vmem [shape: f32[2,32,64], index: 8, kind: input, shape index: {}]
  %s9 = inlined_call_operand.vmem [shape: f32[2,1,64], index: 9, kind: input, shape index: {}]
  %s10 = inlined_call_operand.vmem [shape: f32[2,64,32], index: 10, kind: input, shape index: {}]
  %s11 = inlined_call_operand.vmem [shape: f32[2,1,32], index: 11, kind: input, shape index: {}]
  %s12 = inlined_call_operand.vmem [shape: f32[2,1,32], index: 12, kind: input, shape index: {}]
  %s13 = inlined_call_operand.vmem [shape: f32[2,1,32], index: 13, kind: input, shape index: {}]
  %s14 = inlined_call_operand.hbm [shape: f32[32,128], index: 14, kind: input, shape index: {}]
  %s15 = inlined_call_operand.vmem [shape: f32[1,128], index: 15, kind: input, shape index: {}]
  %s16 = inlined_call_operand.hbm [shape: f32[2,8,128], index: 16, kind: output, shape index: {}]
  %s17 = sld [smem:[#allocation0]]
  $region117: #{tpu_custom_call.1} parent=0
    _
  %s19 = ssub.s32 1, %s17
  %s20 = scalar_select 0, %s19, %s17
  $region1: #{tpu_custom_call.1} parent=0
    #allocation3 [shape = 'u8[8192]{0}', space=vmem, size = 0x2000, scoped, tag = 'input window, operand 0']
    #allocation4 [shape = 's32[2]{0}', space=sflag, size = 0x8, scoped, tag = 'scoped memory for tpu_custom_call.1']
    #allocation5 [shape = 's32[2]{0}', space=sflag, size = 0x8, scoped, tag = 'scoped memory for tpu_custom_call.1']
    #allocation6 [shape = 'u8[4096]{0}', space=vmem, size = 0x1000, scoped, tag = 'input window, operand 1, single buffered']
    #allocation7 [shape = 's32[1]{0}', space=sflag, size = 0x4, scoped, tag = 'scoped memory for tpu_custom_call.1']
    #allocation8 [shape = 'u8[16384]{0}', space=vmem, size = 0x4000, scoped, tag = 'input window, operand 14, single buffered']
    #allocation9 [shape = 'u8[8192]{0}', space=vmem, size = 0x2000, scoped, tag = 'output window, operand 0']
    %21 = vsyncpa [#allocation4], 0
    %s22 = scalar_lea.sflag [#allocation4], 1
    %23 = vsyncpa %s22, 0
    %24 = vsyncpa [#allocation7], 0
    %25 = vsyncpa [#allocation5], 0
    %s26 = scalar_lea.sflag [#allocation5], 1
    %27 = vsyncpa %s26, 0
    loop: start=0, step=1, limit=6
    $region2: #{tpu_custom_call.1} parent=1 // loop_pre_header
      _
    $region3: #{tpu_custom_call.1} parent=1 // loop_header
      %s29 = sphi 0, %s33
      %p30 = scmp.ge.s32.totalorder %s29, 6
      %s36 = sphi 0, %s48
      %s37 = sphi 0, %s44
      %s38 = sphi 0, %s36
      %s39 = sphi 0, %s37
      %s40 = sphi 0, %s38
      %s41 = sphi 0, %s39
      %s51 = sphi 0, %s53
      %s54 = sphi 0, %s51
      %s55 = sphi 0, %s54
      %s71 = sphi 0, %s55
      %s75 = sphi 0, %s75
      %s77 = sphi 0, %s75
      %s78 = sphi 0, %s77
      %s92 = sphi 0, %s78
      %s98 = sphi 0, %s100
      %s101 = sphi 0, %s98
      %s102 = sphi 0, %s101
      %s118 = sphi 0, %s102
      %s124 = sphi 0, %s126
      %s127 = sphi 0, %s124
      %s128 = sphi 0, %s127
      %s144 = sphi 0, %s128
      %s150 = sphi 0, %s152
      %s153 = sphi 0, %s150
      %s154 = sphi 0, %s153
      %s170 = sphi 0, %s154
      %s176 = sphi 0, %s178
      %s179 = sphi 0, %s176
      %s180 = sphi 0, %s179
      %s196 = sphi 0, %s180
      %s202 = sphi 0, %s204
      %s205 = sphi 0, %s202
      %s206 = sphi 0, %s205
      %s222 = sphi 0, %s206
      %s228 = sphi 0, %s230
      %s231 = sphi 0, %s228
      %s232 = sphi 0, %s231
      %s248 = sphi 0, %s232
      %s254 = sphi 0, %s256
      %s257 = sphi 0, %s254
      %s258 = sphi 0, %s257
      %s274 = sphi 0, %s258
      %s280 = sphi 0, %s282
      %s283 = sphi 0, %s280
      %s284 = sphi 0, %s283
      %s300 = sphi 0, %s284
      %s306 = sphi 0, %s308
      %s309 = sphi 0, %s306
      %s310 = sphi 0, %s309
      %s326 = sphi 0, %s310
      %s332 = sphi 0, %s334
      %s335 = sphi 0, %s332
      %s336 = sphi 0, %s335
      %s352 = sphi 0, %s336
      %s358 = sphi 0, %s360
      %s361 = sphi 0, %s358
      %s362 = sphi 0, %s361
      %s378 = sphi 0, %s362
      %s384 = sphi 0, %s386
      %s387 = sphi 0, %s384
      %s388 = sphi 0, %s387
      %s404 = sphi 0, %s388
      %s408 = sphi 0, %s408
      %s410 = sphi 0, %s408
      %s411 = sphi 0, %s410
      %s425 = sphi 0, %s411
      %s429 = sphi 0, %s429
      %s431 = sphi 0, %s429
      %s432 = sphi 0, %s431
      %s446 = sphi 0, %s432
      %s452 = sphi 0, %s454
      %s455 = sphi 0, %s452
      %s456 = sphi 0, %s455
      %s472 = sphi 0, %s456
    $region4: #{tpu_custom_call.1} parent=1 // loop_header_branch
      %32 = sbr.rel (%p30) target = $region8
    $region5: #{tpu_custom_call.1} parent=1 // loop_body
      %s34 = ssub.s32 %s29, 1
      %s35 = ssub.s32 %s29, 2
      %s42 = sadd.s32 1, %s37
      %p43 = scmp.ge.s32.totalorder %s42, 2
      %s44 = scalar_select %p43, 0, %s42
      %s45 = sadd.s32 1, %s36
      %s46 = scalar_select %p43, %s45, %s36
      %p47 = scmp.ge.s32.totalorder %s46, 2
      %s48 = scalar_select %p47, 0, %s46
      %s49 = ssub.s32 %s36, %s48
      %p50 = scmp.eq.s32.totalorder %s49, 0
      %s52 = sadd.s32 %s51, 1
      %s53 = scalar_select %p50, %s51, %s52
      %p56 = pneg %p50
      %p57 = scmp.eq.s32.totalorder %s29, 3
      %p58 = por %p56, %p57
      %p59 = scmp.ne.s32.totalorder %s51, %s54
      %p60 = scmp.eq.s32.totalorder %s29, 0
      %p61 = por %p59, %p60
      %p62 = scmp.ne.s32.totalorder %s51, %s54
      %p63 = scmp.eq.s32.totalorder %s34, 3
      %p64 = por %p62, %p63
      %p65 = scmp.ne.s32.totalorder %s54, %s55
      %p66 = scmp.eq.s32.totalorder %s34, 0
      %p67 = por %p65, %p66
      %p68 = scmp.ne.s32.totalorder %s54, %s55
      %p69 = scmp.eq.s32.totalorder %s35, 3
      %p70 = por %p68, %p69
      %p72 = scmp.ne.s32.totalorder %s55, %s71
      %p73 = scmp.eq.s32.totalorder %s35, 0
      %p74 = por %p72, %p73
      %s76 = sadd.s32 %s75, 1
      %p79 = scmp.eq.s32.totalorder %s29, 3
      %p80 = scmp.ne.s32.totalorder %s75, %s77
      %p81 = scmp.eq.s32.totalorder %s29, 0
      %p82 = por %p80, %p81
      %p83 = scmp.ne.s32.totalorder %s75, %s77
      %p84 = scmp.eq.s32.totalorder %s34, 3
      %p85 = por %p83, %p84
      %p86 = scmp.ne.s32.totalorder %s77, %s78
      %p87 = scmp.eq.s32.totalorder %s34, 0
      %p88 = por %p86, %p87
      %p89 = scmp.ne.s32.totalorder %s77, %s78
      %p90 = scmp.eq.s32.totalorder %s35, 3
      %p91 = por %p89, %p90
      %p93 = scmp.ne.s32.totalorder %s78, %s92
      %p94 = scmp.eq.s32.totalorder %s35, 0
      %p95 = por %p93, %p94
      %s96 = ssub.s32 %s37, %s44
      %p97 = scmp.eq.s32.totalorder %s96, 0
      %s99 = sadd.s32 %s98, 1
      %s100 = scalar_select %p97, %s98, %s99
      %p103 = pneg %p97
      %p104 = scmp.eq.s32.totalorder %s29, 3
      %p105 = por %p103, %p104
      %p106 = scmp.ne.s32.totalorder %s98, %s101
      %p107 = scmp.eq.s32.totalorder %s29, 0
      %p108 = por %p106, %p107
      %p109 = scmp.ne.s32.totalorder %s98, %s101
      %p110 = scmp.eq.s32.totalorder %s34, 3
      %p111 = por %p109, %p110
      %p112 = scmp.ne.s32.totalorder %s101, %s102
      %p113 = scmp.eq.s32.totalorder %s34, 0
      %p114 = por %p112, %p113
      %p115 = scmp.ne.s32.totalorder %s101, %s102
      %p116 = scmp.eq.s32.totalorder %s35, 3
      %p117 = por %p115, %p116
      %p119 = scmp.ne.s32.totalorder %s102, %s118
      %p120 = scmp.eq.s32.totalorder %s35, 0
      %p121 = por %p119, %p120
      %s122 = ssub.s32 %s37, %s44
      %p123 = scmp.eq.s32.totalorder %s122, 0
      %s125 = sadd.s32 %s124, 1
      %s126 = scalar_select %p123, %s124, %s125
      %p129 = pneg %p123
      %p130 = scmp.eq.s32.totalorder %s29, 3
      %p131 = por %p129, %p130
      %p132 = scmp.ne.s32.totalorder %s124, %s127
      %p133 = scmp.eq.s32.totalorder %s29, 0
      %p134 = por %p132, %p133
      %p135 = scmp.ne.s32.totalorder %s124, %s127
      %p136 = scmp.eq.s32.totalorder %s34, 3
      %p137 = por %p135, %p136
      %p138 = scmp.ne.s32.totalorder %s127, %s128
      %p139 = scmp.eq.s32.totalorder %s34, 0
      %p140 = por %p138, %p139
      %p141 = scmp.ne.s32.totalorder %s127, %s128
      %p142 = scmp.eq.s32.totalorder %s35, 3
      %p143 = por %p141, %p142
      %p145 = scmp.ne.s32.totalorder %s128, %s144
      %p146 = scmp.eq.s32.totalorder %s35, 0
      %p147 = por %p145, %p146
      %s148 = ssub.s32 %s37, %s44
      %p149 = scmp.eq.s32.totalorder %s148, 0
      %s151 = sadd.s32 %s150, 1
      %s152 = scalar_select %p149, %s150, %s151
      %p155 = pneg %p149
      %p156 = scmp.eq.s32.totalorder %s29, 3
      %p157 = por %p155, %p156
      %p158 = scmp.ne.s32.totalorder %s150, %s153
      %p159 = scmp.eq.s32.totalorder %s29, 0
      %p160 = por %p158, %p159
      %p161 = scmp.ne.s32.totalorder %s150, %s153
      %p162 = scmp.eq.s32.totalorder %s34, 3
      %p163 = por %p161, %p162
      %p164 = scmp.ne.s32.totalorder %s153, %s154
      %p165 = scmp.eq.s32.totalorder %s34, 0
      %p166 = por %p164, %p165
      %p167 = scmp.ne.s32.totalorder %s153, %s154
      %p168 = scmp.eq.s32.totalorder %s35, 3
      %p169 = por %p167, %p168
      %p171 = scmp.ne.s32.totalorder %s154, %s170
      %p172 = scmp.eq.s32.totalorder %s35, 0
      %p173 = por %p171, %p172
      %s174 = ssub.s32 %s37, %s44
      %p175 = scmp.eq.s32.totalorder %s174, 0
      %s177 = sadd.s32 %s176, 1
      %s178 = scalar_select %p175, %s176, %s177
      %p181 = pneg %p175
      %p182 = scmp.eq.s32.totalorder %s29, 3
      %p183 = por %p181, %p182
      %p184 = scmp.ne.s32.totalorder %s176, %s179
      %p185 = scmp.eq.s32.totalorder %s29, 0
      %p186 = por %p184, %p185
      %p187 = scmp.ne.s32.totalorder %s176, %s179
      %p188 = scmp.eq.s32.totalorder %s34, 3
      %p189 = por %p187, %p188
      %p190 = scmp.ne.s32.totalorder %s179, %s180
      %p191 = scmp.eq.s32.totalorder %s34, 0
      %p192 = por %p190, %p191
      %p193 = scmp.ne.s32.totalorder %s179, %s180
      %p194 = scmp.eq.s32.totalorder %s35, 3
      %p195 = por %p193, %p194
      %p197 = scmp.ne.s32.totalorder %s180, %s196
      %p198 = scmp.eq.s32.totalorder %s35, 0
      %p199 = por %p197, %p198
      %s200 = ssub.s32 %s37, %s44
      %p201 = scmp.eq.s32.totalorder %s200, 0
      %s203 = sadd.s32 %s202, 1
      %s204 = scalar_select %p201, %s202, %s203
      %p207 = pneg %p201
      %p208 = scmp.eq.s32.totalorder %s29, 3
      %p209 = por %p207, %p208
      %p210 = scmp.ne.s32.totalorder %s202, %s205
      %p211 = scmp.eq.s32.totalorder %s29, 0
      %p212 = por %p210, %p211
      %p213 = scmp.ne.s32.totalorder %s202, %s205
      %p214 = scmp.eq.s32.totalorder %s34, 3
      %p215 = por %p213, %p214
      %p216 = scmp.ne.s32.totalorder %s205, %s206
      %p217 = scmp.eq.s32.totalorder %s34, 0
      %p218 = por %p216, %p217
      %p219 = scmp.ne.s32.totalorder %s205, %s206
      %p220 = scmp.eq.s32.totalorder %s35, 3
      %p221 = por %p219, %p220
      %p223 = scmp.ne.s32.totalorder %s206, %s222
      %p224 = scmp.eq.s32.totalorder %s35, 0
      %p225 = por %p223, %p224
      %s226 = ssub.s32 %s37, %s44
      %p227 = scmp.eq.s32.totalorder %s226, 0
      %s229 = sadd.s32 %s228, 1
      %s230 = scalar_select %p227, %s228, %s229
      %p233 = pneg %p227
      %p234 = scmp.eq.s32.totalorder %s29, 3
      %p235 = por %p233, %p234
      %p236 = scmp.ne.s32.totalorder %s228, %s231
      %p237 = scmp.eq.s32.totalorder %s29, 0
      %p238 = por %p236, %p237
      %p239 = scmp.ne.s32.totalorder %s228, %s231
      %p240 = scmp.eq.s32.totalorder %s34, 3
      %p241 = por %p239, %p240
      %p242 = scmp.ne.s32.totalorder %s231, %s232
      %p243 = scmp.eq.s32.totalorder %s34, 0
      %p244 = por %p242, %p243
      %p245 = scmp.ne.s32.totalorder %s231, %s232
      %p246 = scmp.eq.s32.totalorder %s35, 3
      %p247 = por %p245, %p246
      %p249 = scmp.ne.s32.totalorder %s232, %s248
      %p250 = scmp.eq.s32.totalorder %s35, 0
      %p251 = por %p249, %p250
      %s252 = ssub.s32 %s37, %s44
      %p253 = scmp.eq.s32.totalorder %s252, 0
      %s255 = sadd.s32 %s254, 1
      %s256 = scalar_select %p253, %s254, %s255
      %p259 = pneg %p253
      %p260 = scmp.eq.s32.totalorder %s29, 3
      %p261 = por %p259, %p260
      %p262 = scmp.ne.s32.totalorder %s254, %s257
      %p263 = scmp.eq.s32.totalorder %s29, 0
      %p264 = por %p262, %p263
      %p265 = scmp.ne.s32.totalorder %s254, %s257
      %p266 = scmp.eq.s32.totalorder %s34, 3
      %p267 = por %p265, %p266
      %p268 = scmp.ne.s32.totalorder %s257, %s258
      %p269 = scmp.eq.s32.totalorder %s34, 0
      %p270 = por %p268, %p269
      %p271 = scmp.ne.s32.totalorder %s257, %s258
      %p272 = scmp.eq.s32.totalorder %s35, 3
      %p273 = por %p271, %p272
      %p275 = scmp.ne.s32.totalorder %s258, %s274
      %p276 = scmp.eq.s32.totalorder %s35, 0
      %p277 = por %p275, %p276
      %s278 = ssub.s32 %s37, %s44
      %p279 = scmp.eq.s32.totalorder %s278, 0
      %s281 = sadd.s32 %s280, 1
      %s282 = scalar_select %p279, %s280, %s281
      %p285 = pneg %p279
      %p286 = scmp.eq.s32.totalorder %s29, 3
      %p287 = por %p285, %p286
      %p288 = scmp.ne.s32.totalorder %s280, %s283
      %p289 = scmp.eq.s32.totalorder %s29, 0
      %p290 = por %p288, %p289
      %p291 = scmp.ne.s32.totalorder %s280, %s283
      %p292 = scmp.eq.s32.totalorder %s34, 3
      %p293 = por %p291, %p292
      %p294 = scmp.ne.s32.totalorder %s283, %s284
      %p295 = scmp.eq.s32.totalorder %s34, 0
      %p296 = por %p294, %p295
      %p297 = scmp.ne.s32.totalorder %s283, %s284
      %p298 = scmp.eq.s32.totalorder %s35, 3
      %p299 = por %p297, %p298
      %p301 = scmp.ne.s32.totalorder %s284, %s300
      %p302 = scmp.eq.s32.totalorder %s35, 0
      %p303 = por %p301, %p302
      %s304 = ssub.s32 %s37, %s44
      %p305 = scmp.eq.s32.totalorder %s304, 0
      %s307 = sadd.s32 %s306, 1
      %s308 = scalar_select %p305, %s306, %s307
      %p311 = pneg %p305
      %p312 = scmp.eq.s32.totalorder %s29, 3
      %p313 = por %p311, %p312
      %p314 = scmp.ne.s32.totalorder %s306, %s309
      %p315 = scmp.eq.s32.totalorder %s29, 0
      %p316 = por %p314, %p315
      %p317 = scmp.ne.s32.totalorder %s306, %s309
      %p318 = scmp.eq.s32.totalorder %s34, 3
      %p319 = por %p317, %p318
      %p320 = scmp.ne.s32.totalorder %s309, %s310
      %p321 = scmp.eq.s32.totalorder %s34, 0
      %p322 = por %p320, %p321
      %p323 = scmp.ne.s32.totalorder %s309, %s310
      %p324 = scmp.eq.s32.totalorder %s35, 3
      %p325 = por %p323, %p324
      %p327 = scmp.ne.s32.totalorder %s310, %s326
      %p328 = scmp.eq.s32.totalorder %s35, 0
      %p329 = por %p327, %p328
      %s330 = ssub.s32 %s37, %s44
      %p331 = scmp.eq.s32.totalorder %s330, 0
      %s333 = sadd.s32 %s332, 1
      %s334 = scalar_select %p331, %s332, %s333
      %p337 = pneg %p331
      %p338 = scmp.eq.s32.totalorder %s29, 3
      %p339 = por %p337, %p338
      %p340 = scmp.ne.s32.totalorder %s332, %s335
      %p341 = scmp.eq.s32.totalorder %s29, 0
      %p342 = por %p340, %p341
      %p343 = scmp.ne.s32.totalorder %s332, %s335
      %p344 = scmp.eq.s32.totalorder %s34, 3
      %p345 = por %p343, %p344
      %p346 = scmp.ne.s32.totalorder %s335, %s336
      %p347 = scmp.eq.s32.totalorder %s34, 0
      %p348 = por %p346, %p347
      %p349 = scmp.ne.s32.totalorder %s335, %s336
      %p350 = scmp.eq.s32.totalorder %s35, 3
      %p351 = por %p349, %p350
      %p353 = scmp.ne.s32.totalorder %s336, %s352
      %p354 = scmp.eq.s32.totalorder %s35, 0
      %p355 = por %p353, %p354
      %s356 = ssub.s32 %s37, %s44
      %p357 = scmp.eq.s32.totalorder %s356, 0
      %s359 = sadd.s32 %s358, 1
      %s360 = scalar_select %p357, %s358, %s359
      %p363 = pneg %p357
      %p364 = scmp.eq.s32.totalorder %s29, 3
      %p365 = por %p363, %p364
      %p366 = scmp.ne.s32.totalorder %s358, %s361
      %p367 = scmp.eq.s32.totalorder %s29, 0
      %p368 = por %p366, %p367
      %p369 = scmp.ne.s32.totalorder %s358, %s361
      %p370 = scmp.eq.s32.totalorder %s34, 3
      %p371 = por %p369, %p370
      %p372 = scmp.ne.s32.totalorder %s361, %s362
      %p373 = scmp.eq.s32.totalorder %s34, 0
      %p374 = por %p372, %p373
      %p375 = scmp.ne.s32.totalorder %s361, %s362
      %p376 = scmp.eq.s32.totalorder %s35, 3
      %p377 = por %p375, %p376
      %p379 = scmp.ne.s32.totalorder %s362, %s378
      %p380 = scmp.eq.s32.totalorder %s35, 0
      %p381 = por %p379, %p380
      %s382 = ssub.s32 %s37, %s44
      %p383 = scmp.eq.s32.totalorder %s382, 0
      %s385 = sadd.s32 %s384, 1
      %s386 = scalar_select %p383, %s384, %s385
      %p389 = pneg %p383
      %p390 = scmp.eq.s32.totalorder %s29, 3
      %p391 = por %p389, %p390
      %p392 = scmp.ne.s32.totalorder %s384, %s387
      %p393 = scmp.eq.s32.totalorder %s29, 0
      %p394 = por %p392, %p393
      %p395 = scmp.ne.s32.totalorder %s384, %s387
      %p396 = scmp.eq.s32.totalorder %s34, 3
      %p397 = por %p395, %p396
      %p398 = scmp.ne.s32.totalorder %s387, %s388
      %p399 = scmp.eq.s32.totalorder %s34, 0
      %p400 = por %p398, %p399
      %p401 = scmp.ne.s32.totalorder %s387, %s388
      %p402 = scmp.eq.s32.totalorder %s35, 3
      %p403 = por %p401, %p402
      %p405 = scmp.ne.s32.totalorder %s388, %s404
      %p406 = scmp.eq.s32.totalorder %s35, 0
      %p407 = por %p405, %p406
      %s409 = sadd.s32 %s408, 1
      %p412 = scmp.eq.s32.totalorder %s29, 3
      %p413 = scmp.ne.s32.totalorder %s408, %s410
      %p414 = scmp.eq.s32.totalorder %s29, 0
      %p415 = por %p413, %p414
      %p416 = scmp.ne.s32.totalorder %s408, %s410
      %p417 = scmp.eq.s32.totalorder %s34, 3
      %p418 = por %p416, %p417
      %p419 = scmp.ne.s32.totalorder %s410, %s411
      %p420 = scmp.eq.s32.totalorder %s34, 0
      %p421 = por %p419, %p420
      %p422 = scmp.ne.s32.totalorder %s410, %s411
      %p423 = scmp.eq.s32.totalorder %s35, 3
      %p424 = por %p422, %p423
      %p426 = scmp.ne.s32.totalorder %s411, %s425
      %p427 = scmp.eq.s32.totalorder %s35, 0
      %p428 = por %p426, %p427
      %s430 = sadd.s32 %s429, 1
      %p433 = scmp.eq.s32.totalorder %s29, 3
      %p434 = scmp.ne.s32.totalorder %s429, %s431
      %p435 = scmp.eq.s32.totalorder %s29, 0
      %p436 = por %p434, %p435
      %p437 = scmp.ne.s32.totalorder %s429, %s431
      %p438 = scmp.eq.s32.totalorder %s34, 3
      %p439 = por %p437, %p438
      %p440 = scmp.ne.s32.totalorder %s431, %s432
      %p441 = scmp.eq.s32.totalorder %s34, 0
      %p442 = por %p440, %p441
      %p443 = scmp.ne.s32.totalorder %s431, %s432
      %p444 = scmp.eq.s32.totalorder %s35, 3
      %p445 = por %p443, %p444
      %p447 = scmp.ne.s32.totalorder %s432, %s446
      %p448 = scmp.eq.s32.totalorder %s35, 0
      %p449 = por %p447, %p448
      %s450 = ssub.s32 %s36, %s48
      %p451 = scmp.eq.s32.totalorder %s450, 0
      %s453 = sadd.s32 %s452, 1
      %s454 = scalar_select %p451, %s452, %s453
      %p457 = pneg %p451
      %p458 = scmp.eq.s32.totalorder %s29, 3
      %p459 = por %p457, %p458
      %p460 = scmp.ne.s32.totalorder %s452, %s455
      %p461 = scmp.eq.s32.totalorder %s29, 0
      %p462 = por %p460, %p461
      %p463 = scmp.ne.s32.totalorder %s452, %s455
      %p464 = scmp.eq.s32.totalorder %s34, 3
      %p465 = por %p463, %p464
      %p466 = scmp.ne.s32.totalorder %s455, %s456
      %p467 = scmp.eq.s32.totalorder %s34, 0
      %p468 = por %p466, %p467
      %p469 = scmp.ne.s32.totalorder %s455, %s456
      %p470 = scmp.eq.s32.totalorder %s35, 3
      %p471 = por %p469, %p470
      %p473 = scmp.ne.s32.totalorder %s456, %s472
      %p474 = scmp.eq.s32.totalorder %s35, 0
      %p475 = por %p473, %p474
      %p476 = scmp.le.s32.totalorder 1, %s29
      %p477 = scmp.lt.s32.totalorder %s29, 5
      %p478 = pnand %p476, %p477
      %p479 = pneg %p478
      // Predicated region
      $region9: #{tpu_custom_call.1} parent=5 // pred_check
        _
      $region10: #{tpu_custom_call.1} parent=5 // pred_check_branch
        %481 = sbr.rel (%p478) target = $region12
      $region11: #{tpu_custom_call.1} parent=5 // pred_region
        %s482 = ssub.s32 %s29, 1
        // Predicated region
        $region13: #{tpu_custom_call.1} parent=11 // pred_check
          %p483 = pneg %p88
        $region14: #{tpu_custom_call.1} parent=11 // pred_check_branch
          %485 = sbr.rel (%p483) target = $region16
        $region15: #{tpu_custom_call.1} parent=11 // pred_region
          %s487 = ssub.s32 128, 128
          %488 = vsyncadd [#allocation7], %s487
          %s490 = sshll.u32 [#allocation6], 4
          %s491 = int_to_ptr.vmem [resolvable:$true] %s490
          %493 = dma.hbm_to_vmem [thread:$0]  %s1, 128, %s491, [#allocation7]
        $region16: #{tpu_custom_call.1} parent=11 // pred_fallthru
          _
        // Predicated region
        $region17: #{tpu_custom_call.1} parent=11 // pred_check
          %p494 = pneg %p421
        $region18: #{tpu_custom_call.1} parent=11 // pred_check_branch
          %496 = sbr.rel (%p494) target = $region20
        $region19: #{tpu_custom_call.1} parent=11 // pred_region
          %s498 = ssub.s32 512, 512
          %499 = vsyncadd [#allocation7], %s498
          %s500 = sshll.u32 [#allocation8], 4
          %s501 = int_to_ptr.vmem [resolvable:$true] %s500
          %506 = dma.hbm_to_vmem [thread:$0]  %s14, 512, %s501, [#allocation7], 128, 128, 8
        $region20: #{tpu_custom_call.1} parent=11 // pred_fallthru
          _
        // Predicated region
        $region21: #{tpu_custom_call.1} parent=11 // pred_check
          %p507 = pneg %p442
        $region22: #{tpu_custom_call.1} parent=11 // pred_check_branch
          %509 = sbr.rel (%p507) target = $region24
        $region23: #{tpu_custom_call.1} parent=11 // pred_region
          _
        $region24: #{tpu_custom_call.1} parent=11 // pred_fallthru
          _
      $region12: #{tpu_custom_call.1} parent=5 // pred_fallthru
        _
      %p510 = scmp.lt.s32.totalorder %s29, 4
      // Predicated region
      $region25: #{tpu_custom_call.1} parent=5 // pred_check
        %p511 = pneg %p510
      $region26: #{tpu_custom_call.1} parent=5 // pred_check_branch
        %513 = sbr.rel (%p511) target = $region28
      $region27: #{tpu_custom_call.1} parent=5 // pred_region
        // Predicated region
        $region29: #{tpu_custom_call.1} parent=27 // pred_check
          %p514 = pneg %p61
        $region30: #{tpu_custom_call.1} parent=27 // pred_check_branch
          %516 = sbr.rel (%p514) target = $region32
        $region31: #{tpu_custom_call.1} parent=27 // pred_region
          %s517 = sand.u32 %s51, 1
          %s518 = scalar_lea.sflag [#allocation4], %s517
          %s519 = sand.u32 %s51, 1
          %s520 = smul.addr %s519, 8
          %s521 = scalar_lea.vmem [#allocation3], %s520
          %s523 = ssub.s32 128, 128
          %524 = vsyncadd %s518, %s523
          %s525 = smul.addr %s36, 128
          %s526 = scalar_lea.hbm %s0, %s525
          %s528 = sshll.u32 %s521, 4
          %s529 = int_to_ptr.vmem [resolvable:$true] %s528
          %531 = dma.hbm_to_vmem [thread:$0]  %s526, 128, %s529, %s518
        $region32: #{tpu_custom_call.1} parent=27 // pred_fallthru
          _
        // Predicated region
        $region33: #{tpu_custom_call.1} parent=27 // pred_check
          %p532 = pneg %p108
        $region34: #{tpu_custom_call.1} parent=27 // pred_check_branch
          %534 = sbr.rel (%p532) target = $region36
        $region35: #{tpu_custom_call.1} parent=27 // pred_region
          %p535 = scmp.lt.s32.totalorder %s37, 1
          %s536 = scalar_select %p535, %s37, 1
          %s537 = smul.addr %s536, 4
          %s538 = smul.addr %s537, 8
          %s539 = scalar_lea.vmem %s2, %s538
        $region36: #{tpu_custom_call.1} parent=27 // pred_fallthru
          _
        // Predicated region
        $region37: #{tpu_custom_call.1} parent=27 // pred_check
          %p540 = pneg %p134
        $region38: #{tpu_custom_call.1} parent=27 // pred_check_branch
          %542 = sbr.rel (%p540) target = $region40
        $region39: #{tpu_custom_call.1} parent=27 // pred_region
          %p543 = scmp.lt.s32.totalorder %s37, 1
          %s544 = scalar_select %p543, %s37, 1
          %s545 = scalar_lea.vmem %s3, %s544
        $region40: #{tpu_custom_call.1} parent=27 // pred_fallthru
          _
        // Predicated region
        $region41: #{tpu_custom_call.1} parent=27 // pred_check
          %p546 = pneg %p160
        $region42: #{tpu_custom_call.1} parent=27 // pred_check_branch
          %548 = sbr.rel (%p546) target = $region44
        $region43: #{tpu_custom_call.1} parent=27 // pred_region
          %p549 = scmp.lt.s32.totalorder %s37, 1
          %s550 = scalar_select %p549, %s37, 1
          %s551 = smul.addr %s550, 4
          %s552 = smul.addr %s551, 8
          %s553 = scalar_lea.vmem %s4, %s552
        $region44: #{tpu_custom_call.1} parent=27 // pred_fallthru
          _
        // Predicated region
        $region45: #{tpu_custom_call.1} parent=27 // pred_check
          %p554 = pneg %p186
        $region46: #{tpu_custom_call.1} parent=27 // pred_check_branch
          %556 = sbr.rel (%p554) target = $region48
        $region47: #{tpu_custom_call.1} parent=27 // pred_region
          %p557 = scmp.lt.s32.totalorder %s37, 1
          %s558 = scalar_select %p557, %s37, 1
          %s559 = scalar_lea.vmem %s5, %s558
        $region48: #{tpu_custom_call.1} parent=27 // pred_fallthru
          _
        // Predicated region
        $region49: #{tpu_custom_call.1} parent=27 // pred_check
          %p560 = pneg %p212
        $region50: #{tpu_custom_call.1} parent=27 // pred_check_branch
          %562 = sbr.rel (%p560) target = $region52
        $region51: #{tpu_custom_call.1} parent=27 // pred_region
          %p563 = scmp.lt.s32.totalorder %s37, 1
          %s564 = scalar_select %p563, %s37, 1
          %s565 = scalar_lea.vmem %s6, %s564
        $region52: #{tpu_custom_call.1} parent=27 // pred_fallthru
          _
        // Predicated region
        $region53: #{tpu_custom_call.1} parent=27 // pred_check
          %p566 = pneg %p238
        $region54: #{tpu_custom_call.1} parent=27 // pred_check_branch
          %568 = sbr.rel (%p566) target = $region56
        $region55: #{tpu_custom_call.1} parent=27 // pred_region
          %p569 = scmp.lt.s32.totalorder %s37, 1
          %s570 = scalar_select %p569, %s37, 1
          %s571 = scalar_lea.vmem %s7, %s570
        $region56: #{tpu_custom_call.1} parent=27 // pred_fallthru
          _
        // Predicated region
        $region57: #{tpu_custom_call.1} parent=27 // pred_check
          %p572 = pneg %p264
        $region58: #{tpu_custom_call.1} parent=27 // pred_check_branch
          %574 = sbr.rel (%p572) target = $region60
        $region59: #{tpu_custom_call.1} parent=27 // pred_region
          %p575 = scmp.lt.s32.totalorder %s37, 1
          %s576 = scalar_select %p575, %s37, 1
          %s577 = smul.addr %s576, 4
          %s578 = smul.addr %s577, 8
          %s579 = scalar_lea.vmem %s8, %s578
        $region60: #{tpu_custom_call.1} parent=27 // pred_fallthru
          _
        // Predicated region
        $region61: #{tpu_custom_call.1} parent=27 // pred_check
          %p580 = pneg %p290
        $region62: #{tpu_custom_call.1} parent=27 // pred_check_branch
          %582 = sbr.rel (%p580) target = $region64
        $region63: #{tpu_custom_call.1} parent=27 // pred_region
          %p583 = scmp.lt.s32.totalorder %s37, 1
          %s584 = scalar_select %p583, %s37, 1
          %s585 = scalar_lea.vmem %s9, %s584
        $region64: #{tpu_custom_call.1} parent=27 // pred_fallthru
          _
        // Predicated region
        $region65: #{tpu_custom_call.1} parent=27 // pred_check
          %p586 = pneg %p316
        $region66: #{tpu_custom_call.1} parent=27 // pred_check_branch
          %588 = sbr.rel (%p586) target = $region68
        $region67: #{tpu_custom_call.1} parent=27 // pred_region
          %p589 = scmp.lt.s32.totalorder %s37, 1
          %s590 = scalar_select %p589, %s37, 1
          %s591 = smul.addr %s590, 8
          %s592 = smul.addr %s591, 8
          %s593 = scalar_lea.vmem %s10, %s592
        $region68: #{tpu_custom_call.1} parent=27 // pred_fallthru
          _
        // Predicated region
        $region69: #{tpu_custom_call.1} parent=27 // pred_check
          %p594 = pneg %p342
        $region70: #{tpu_custom_call.1} parent=27 // pred_check_branch
          %596 = sbr.rel (%p594) target = $region72
        $region71: #{tpu_custom_call.1} parent=27 // pred_region
          %p597 = scmp.lt.s32.totalorder %s37, 1
          %s598 = scalar_select %p597, %s37, 1
          %s599 = scalar_lea.vmem %s11, %s598
        $region72: #{tpu_custom_call.1} parent=27 // pred_fallthru
          _
        // Predicated region
        $region73: #{tpu_custom_call.1} parent=27 // pred_check
          %p600 = pneg %p368
        $region74: #{tpu_custom_call.1} parent=27 // pred_check_branch
          %602 = sbr.rel (%p600) target = $region76
        $region75: #{tpu_custom_call.1} parent=27 // pred_region
          %p603 = scmp.lt.s32.totalorder %s37, 1
          %s604 = scalar_select %p603, %s37, 1
          %s605 = scalar_lea.vmem %s12, %s604
        $region76: #{tpu_custom_call.1} parent=27 // pred_fallthru
          _
        // Predicated region
        $region77: #{tpu_custom_call.1} parent=27 // pred_check
          %p606 = pneg %p394
        $region78: #{tpu_custom_call.1} parent=27 // pred_check_branch
          %608 = sbr.rel (%p606) target = $region80
        $region79: #{tpu_custom_call.1} parent=27 // pred_region
          %p609 = scmp.lt.s32.totalorder %s37, 1
          %s610 = scalar_select %p609, %s37, 1
          %s611 = scalar_lea.vmem %s13, %s610
        $region80: #{tpu_custom_call.1} parent=27 // pred_fallthru
          _
      $region28: #{tpu_custom_call.1} parent=5 // pred_fallthru
        _
      %p612 = scmp.le.s32.totalorder 1, %s29
      %p613 = scmp.lt.s32.totalorder %s29, 5
      %p614 = pnand %p612, %p613
      %p615 = pneg %p614
      // Predicated region
      $region81: #{tpu_custom_call.1} parent=5 // pred_check
        _
      $region82: #{tpu_custom_call.1} parent=5 // pred_check_branch
        %617 = sbr.rel (%p614) target = $region84
      $region83: #{tpu_custom_call.1} parent=5 // pred_region
        %s618 = ssub.s32 %s29, 1
        %s619 = sand.u32 %s54, 1
        %s620 = scalar_lea.sflag [#allocation4], %s619
        %s621 = sand.u32 %s54, 1
        %s622 = smul.addr %s621, 8
        %s623 = scalar_lea.vmem [#allocation3], %s622
        // Predicated region
        $region85: #{tpu_custom_call.1} parent=83 // pred_check
          %p624 = pneg %p67
        $region86: #{tpu_custom_call.1} parent=83 // pred_check_branch
          %626 = sbr.rel (%p624) target = $region88
        $region87: #{tpu_custom_call.1} parent=83 // pred_region
          %627 = dma.done %s620, 128
        $region88: #{tpu_custom_call.1} parent=83 // pred_fallthru
          _
        // Predicated region
        $region89: #{tpu_custom_call.1} parent=83 // pred_check
          %p628 = pneg %p88
        $region90: #{tpu_custom_call.1} parent=83 // pred_check_branch
          %630 = sbr.rel (%p628) target = $region92
        $region91: #{tpu_custom_call.1} parent=83 // pred_region
          %631 = dma.done [#allocation7], 128
        $region92: #{tpu_custom_call.1} parent=83 // pred_fallthru
          _
        // Predicated region
        $region93: #{tpu_custom_call.1} parent=83 // pred_check
          %p632 = pneg %p421
        $region94: #{tpu_custom_call.1} parent=83 // pred_check_branch
          %634 = sbr.rel (%p632) target = $region96
        $region95: #{tpu_custom_call.1} parent=83 // pred_region
          %635 = dma.done [#allocation7], 512
        $region96: #{tpu_custom_call.1} parent=83 // pred_fallthru
          _
        %s636 = sand.u32 %s54, 1
        %s637 = scalar_lea.sflag [#allocation4], %s636
        %s638 = sand.u32 %s54, 1
        %s639 = smul.addr %s638, 8
        %s640 = scalar_lea.vmem [#allocation3], %s639
        %p641 = pneg %p67
        %p642 = pneg %p64
        %p643 = pneg %p88
        %p644 = pneg %p85
        %p645 = scmp.lt.s32.totalorder %s39, 1
        %s646 = scalar_select %p645, %s39, 1
        %s647 = smul.addr %s646, 4
        %s648 = smul.addr %s647, 8
        %s649 = scalar_lea.vmem %s2, %s648
        %p650 = pneg %p114
        %p651 = pneg %p111
        %p652 = scmp.lt.s32.totalorder %s39, 1
        %s653 = scalar_select %p652, %s39, 1
        %s654 = scalar_lea.vmem %s3, %s653
        %p655 = pneg %p140
        %p656 = pneg %p137
        %p657 = scmp.lt.s32.totalorder %s39, 1
        %s658 = scalar_select %p657, %s39, 1
        %s659 = smul.addr %s658, 4
        %s660 = smul.addr %s659, 8
        %s661 = scalar_lea.vmem %s4, %s660
        %p662 = pneg %p166
        %p663 = pneg %p163
        %p664 = scmp.lt.s32.totalorder %s39, 1
        %s665 = scalar_select %p664, %s39, 1
        %s666 = scalar_lea.vmem %s5, %s665
        %p667 = pneg %p192
        %p668 = pneg %p189
        %p669 = scmp.lt.s32.totalorder %s39, 1
        %s670 = scalar_select %p669, %s39, 1
        %s671 = scalar_lea.vmem %s6, %s670
        %p672 = pneg %p218
        %p673 = pneg %p215
        %p674 = scmp.lt.s32.totalorder %s39, 1
        %s675 = scalar_select %p674, %s39, 1
        %s676 = scalar_lea.vmem %s7, %s675
        %p677 = pneg %p244
        %p678 = pneg %p241
        %p679 = scmp.lt.s32.totalorder %s39, 1
        %s680 = scalar_select %p679, %s39, 1
        %s681 = smul.addr %s680, 4
        %s682 = smul.addr %s681, 8
        %s683 = scalar_lea.vmem %s8, %s682
        %p684 = pneg %p270
        %p685 = pneg %p267
        %p686 = scmp.lt.s32.totalorder %s39, 1
        %s687 = scalar_select %p686, %s39, 1
        %s688 = scalar_lea.vmem %s9, %s687
        %p689 = pneg %p296
        %p690 = pneg %p293
        %p691 = scmp.lt.s32.totalorder %s39, 1
        %s692 = scalar_select %p691, %s39, 1
        %s693 = smul.addr %s692, 8
        %s694 = smul.addr %s693, 8
        %s695 = scalar_lea.vmem %s10, %s694
        %p696 = pneg %p322
        %p697 = pneg %p319
        %p698 = scmp.lt.s32.totalorder %s39, 1
        %s699 = scalar_select %p698, %s39, 1
        %s700 = scalar_lea.vmem %s11, %s699
        %p701 = pneg %p348
        %p702 = pneg %p345
        %p703 = scmp.lt.s32.totalorder %s39, 1
        %s704 = scalar_select %p703, %s39, 1
        %s705 = scalar_lea.vmem %s12, %s704
        %p706 = pneg %p374
        %p707 = pneg %p371
        %p708 = scmp.lt.s32.totalorder %s39, 1
        %s709 = scalar_select %p708, %s39, 1
        %s710 = scalar_lea.vmem %s13, %s709
        %p711 = pneg %p400
        %p712 = pneg %p397
        %p713 = pneg %p421
        %p714 = pneg %p418
        %p715 = pneg %p442
        %p716 = pneg %p439
        %p717 = pneg %p468
        %p718 = pneg %p465
        %s719 = sand.u32 %s455, 1
        %s720 = scalar_lea.sflag [#allocation5], %s719
        %s721 = sand.u32 %s455, 1
        %s722 = smul.addr %s721, 8
        %s723 = scalar_lea.vmem [#allocation9], %s722
        %p724 = scmp.lt.s32.totalorder %s39, 1
        %s725 = scalar_select %p724, %s39, 1
        %s726 = smul.addr %s725, 4
        %s727 = smul.addr %s726, 8
        %s728 = scalar_lea.vmem %s2, %s727
        %p729 = scmp.lt.s32.totalorder %s39, 1
        %s730 = scalar_select %p729, %s39, 1
        %s731 = scalar_lea.vmem %s3, %s730
        %p732 = scmp.lt.s32.totalorder %s39, 1
        %s733 = scalar_select %p732, %s39, 1
        %s734 = smul.addr %s733, 4
        %s735 = smul.addr %s734, 8
        %s736 = scalar_lea.vmem %s4, %s735
        %p737 = scmp.lt.s32.totalorder %s39, 1
        %s738 = scalar_select %p737, %s39, 1
        %s739 = scalar_lea.vmem %s5, %s738
        %p740 = scmp.lt.s32.totalorder %s39, 1
        %s741 = scalar_select %p740, %s39, 1
        %s742 = scalar_lea.vmem %s6, %s741
        %p743 = scmp.lt.s32.totalorder %s39, 1
        %s744 = scalar_select %p743, %s39, 1
        %s745 = scalar_lea.vmem %s7, %s744
        %p746 = scmp.lt.s32.totalorder %s39, 1
        %s747 = scalar_select %p746, %s39, 1
        %s748 = smul.addr %s747, 4
        %s749 = smul.addr %s748, 8
        %s750 = scalar_lea.vmem %s8, %s749
        %p751 = scmp.lt.s32.totalorder %s39, 1
        %s752 = scalar_select %p751, %s39, 1
        %s753 = scalar_lea.vmem %s9, %s752
        %p754 = scmp.lt.s32.totalorder %s39, 1
        %s755 = scalar_select %p754, %s39, 1
        %s756 = smul.addr %s755, 8
        %s757 = smul.addr %s756, 8
        %s758 = scalar_lea.vmem %s10, %s757
        %p759 = scmp.lt.s32.totalorder %s39, 1
        %s760 = scalar_select %p759, %s39, 1
        %s761 = scalar_lea.vmem %s11, %s760
        %p762 = scmp.lt.s32.totalorder %s39, 1
        %s763 = scalar_select %p762, %s39, 1
        %s764 = scalar_lea.vmem %s12, %s763
        %p765 = scmp.lt.s32.totalorder %s39, 1
        %s766 = scalar_select %p765, %s39, 1
        %s767 = scalar_lea.vmem %s13, %s766
        %p768 = scmp.eq.s32.totalorder %s39, 0
        // Predicated region
        $region97: #{tpu_custom_call.1} parent=83 // pred_check
          %p769 = pneg %p768
        $region98: #{tpu_custom_call.1} parent=83 // pred_check_branch
          %771 = sbr.rel (%p769) target = $region100
        $region99: #{tpu_custom_call.1} parent=83 // pred_region
          %v772 = vld [vmem:[%s623] sm:$0xff]
          %v773 = vld [vmem:[#allocation6] sm:$0xff]
          %v774 = vadd.f32 %v772, %v773
          %vm775 = vcmask 261120
          %776 = vst.msk [vmem:[#allocation2] sm:$0xff] %vm775, %v774
        $region100: #{tpu_custom_call.1} parent=83 // pred_fallthru
          _
        %v777 = vld [vmem:[#allocation2] sm:$0xff]
        %v778 = vld [vmem:[%s728] sm:$0xff]
        %v779 = vld [vmem:[%s728 + $0x8] sm:$0xff]
        %v780 = vld [vmem:[%s728 + $0x10] sm:$0xff]
        %v781 = vld [vmem:[%s728 + $0x18] sm:$0xff]
        %v782 = vld [vmem:[%s731] sm:$0x1]
        %v784 = vlaneseq
        %v785 = vshrl.u32 %v784, 7
        %v786 = vsub.s32 0, %v785
        %v787 = vrot.slane %v782, %v786
        %vm789 = vcmask 261120
        %v791 = vsel %vm789, %v777, 0
        %793 = vmatprep.subr.mxu0 0.0
        %794 = vmatpush1.msra.mxu0 0.0
        %795 = vmatprep.subr.mxu0 0.0
        %796 = vmatpush1.msra.mxu0 0.0
        %797 = vmatprep.subr.mxu0 0.0
        %798 = vmatpush1.msra.mxu0 0.0
        %799 = vmatprep.subr.mxu0 0.0
        %800 = vmatpush1.msra.mxu0 0.0
        %801 = vmatprep.subr.mxu0 0.0
        %802 = vmatpush1.msra.mxu0 0.0
        %803 = vmatprep.subr.mxu0 0.0
        %804 = vmatpush1.msra.mxu0 0.0
        %805 = vmatprep.subr.mxu0 0.0
        %806 = vmatpush1.msra.mxu0 0.0
        %807 = vmatprep.subr.mxu0 0.0
        %808 = vmatpush1.msra.mxu0 0.0
        %809 = vmatprep.subr.mxu0 0.0
        %810 = vmatpush1.msra.mxu0 0.0
        %811 = vmatprep.subr.mxu0 0.0
        %812 = vmatpush1.msra.mxu0 0.0
        %813 = vmatprep.subr.mxu0 0.0
        %814 = vmatpush1.msra.mxu0 0.0
        %815 = vmatprep.subr.mxu0 0.0
        %816 = vmatpush1.msra.mxu0 0.0
        %817 = vmatprep.subr.mxu0 0.0
        %818 = vmatpush1.msra.mxu0 %v781
        %819 = vmatprep.subr.mxu0 0.0
        %820 = vmatpush1.msra.mxu0 %v780
        %821 = vmatprep.subr.mxu0 0.0
        %822 = vmatpush1.msra.mxu0 %v779
        %823 = vmatprep.subr.mxu0 0.0
        %824 = vmatpush1.msra.mxu0 %v778
        %825 = vmatprep.subr.mxu0 0.0
        %826 = vmatpush2.msra.mxu0 0.0
        %827 = vmatprep.subr.mxu0 0.0
        %828 = vmatpush2.msra.mxu0 0.0
        %829 = vmatprep.subr.mxu0 0.0
        %830 = vmatpush2.msra.mxu0 0.0
        %831 = vmatprep.subr.mxu0 0.0
        %832 = vmatpush2.msra.mxu0 0.0
        %833 = vmatprep.subr.mxu0 0.0
        %834 = vmatpush2.msra.mxu0 0.0
        %835 = vmatprep.subr.mxu0 0.0
        %836 = vmatpush2.msra.mxu0 0.0
        %837 = vmatprep.subr.mxu0 0.0
        %838 = vmatpush2.msra.mxu0 0.0
        %839 = vmatprep.subr.mxu0 0.0
        %840 = vmatpush2.msra.mxu0 0.0
        %841 = vmatprep.subr.mxu0 0.0
        %842 = vmatpush2.msra.mxu0 0.0
        %843 = vmatprep.subr.mxu0 0.0
        %844 = vmatpush2.msra.mxu0 0.0
        %845 = vmatprep.subr.mxu0 0.0
        %846 = vmatpush2.msra.mxu0 0.0
        %847 = vmatprep.subr.mxu0 0.0
        %848 = vmatpush2.msra.mxu0 0.0
        %849 = vmatprep.subr.mxu0 0.0
        %850 = vmatpush2.msra.mxu0 0.0
        %851 = vmatprep.subr.mxu0 0.0
        %852 = vmatpush2.msra.mxu0 0.0
        %853 = vmatprep.subr.mxu0 0.0
        %854 = vmatpush2.msra.mxu0 0.0
        %855 = vmatprep.subr.mxu0 0.0
        %856 = vmatpush2.msra.mxu0 0.0
        %857 = vmatprep.mubr.f32.mxu0 0.0
        %858 = vmatmul.mubr.f32.gmra.mxu0 %v791
        %v859 = vpop.f32.mrf.mxu0
        %v860 = vadd.f32 %v787, %v859
        %v861 = vpop.f32.mrf.mxu0
        %862 = vdwg.mxu0
        %864 = vrot.lane.b32.xlu0 %v860, 96
        %v865 = vpop.permute.xlu0 %864
        %v866 = vsel %vm789, %v860, 0
        %v868 = vsel %vm789, %v865, 0
        %870 = vmatprep.subr.mxu0 0.0
        %871 = vmatpush1.xpose.msra.mxu0 0.0
        %872 = vmatprep.subr.mxu0 0.0
        %873 = vmatpush1.xpose.msra.mxu0 0.0
        %874 = vmatprep.subr.mxu0 0.0
        %875 = vmatpush1.xpose.msra.mxu0 0.0
        %876 = vmatprep.subr.mxu0 0.0
        %877 = vmatpush1.xpose.msra.mxu0 0.0
        %878 = vmatprep.subr.mxu0 0.0
        %879 = vmatpush1.xpose.msra.mxu0 0.0
        %880 = vmatprep.subr.mxu0 0.0
        %881 = vmatpush1.xpose.msra.mxu0 0.0
        %882 = vmatprep.subr.mxu0 0.0
        %883 = vmatpush1.xpose.msra.mxu0 0.0
        %884 = vmatprep.subr.mxu0 0.0
        %885 = vmatpush1.xpose.msra.mxu0 0.0
        %886 = vmatprep.subr.mxu0 0.0
        %887 = vmatpush1.xpose.msra.mxu0 0.0
        %888 = vmatprep.subr.mxu0 0.0
        %889 = vmatpush1.xpose.msra.mxu0 0.0
        %890 = vmatprep.subr.mxu0 0.0
        %891 = vmatpush1.xpose.msra.mxu0 0.0
        %892 = vmatprep.subr.mxu0 0.0
        %893 = vmatpush1.xpose.msra.mxu0 0.0
        %894 = vmatprep.subr.mxu0 0.0
        %895 = vmatpush1.xpose.msra.mxu0 0.0
        %896 = vmatprep.subr.mxu0 0.0
        %897 = vmatpush1.xpose.msra.mxu0 0.0
        %898 = vmatprep.subr.mxu0 0.0
        %899 = vmatpush1.xpose.msra.mxu0 0.0
        %900 = vmatprep.subr.mxu0 0.0
        %901 = vmatpush1.xpose.msra.mxu0 %v868
        %902 = vmatprep.subr.mxu0 0.0
        %903 = vmatpush2.xpose.msra.mxu0 0.0
        %904 = vmatprep.subr.mxu0 0.0
        %905 = vmatpush2.xpose.msra.mxu0 0.0
        %906 = vmatprep.subr.mxu0 0.0
        %907 = vmatpush2.xpose.msra.mxu0 0.0
        %908 = vmatprep.subr.mxu0 0.0
        %909 = vmatpush2.xpose.msra.mxu0 0.0
        %910 = vmatprep.subr.mxu0 0.0
        %911 = vmatpush2.xpose.msra.mxu0 0.0
        %912 = vmatprep.subr.mxu0 0.0
        %913 = vmatpush2.xpose.msra.mxu0 0.0
        %914 = vmatprep.subr.mxu0 0.0
        %915 = vmatpush2.xpose.msra.mxu0 0.0
        %916 = vmatprep.subr.mxu0 0.0
        %917 = vmatpush2.xpose.msra.mxu0 0.0
        %918 = vmatprep.subr.mxu0 0.0
        %919 = vmatpush2.xpose.msra.mxu0 0.0
        %920 = vmatprep.subr.mxu0 0.0
        %921 = vmatpush2.xpose.msra.mxu0 0.0
        %922 = vmatprep.subr.mxu0 0.0
        %923 = vmatpush2.xpose.msra.mxu0 0.0
        %924 = vmatprep.subr.mxu0 0.0
        %925 = vmatpush2.xpose.msra.mxu0 0.0
        %926 = vmatprep.subr.mxu0 0.0
        %927 = vmatpush2.xpose.msra.mxu0 0.0
        %928 = vmatprep.subr.mxu0 0.0
        %929 = vmatpush2.xpose.msra.mxu0 0.0
        %930 = vmatprep.subr.mxu0 0.0
        %931 = vmatpush2.xpose.msra.mxu0 0.0
        %932 = vmatprep.subr.mxu0 0.0
        %933 = vmatpush2.xpose.msra.mxu0 0.0
        %934 = vmatprep.mubr.f32.mxu0 0.0
        %935 = vmatmul.mubr.f32.gmra.mxu0 %v866
        %v936 = vpop.f32.mrf.mxu0
        %v937 = vadd.f32 0.0, %v936
        %v938 = vpop.f32.mrf.mxu0
        %939 = vdwg.mxu0
        %vm940 = vcmask 64512
        %v941 = vsel %vm940, %v937, -inf
        %942 = vmax.xlane.f32.xlu0 %v941
        %v943 = vpop.xlane.xlu0 %942
        %v944 = vsub.f32 %v937, %v943
        %v945 = vmul.f32 %v944, 1.442695
        %v946 = vpow.pop %v945
        %v947 = vsel %vm940, %v946, 0.0
        %948 = vadd.xlane.f32.xlu0 %v947
        %v949 = vpop.xlane.xlu0 %948
        %v950 = vrcp.pop %v949
        %v951 = vmul.f32 %v946, %v950
        %952 = vrot.lane.b32.xlu0 %v860, 64
        %v953 = vpop.permute.xlu0 %952
        %v956 = vsel %vm940, %v951, 0
        %958 = vmatprep.subr.mxu0 0.0
        %959 = vmatpush1.msra.mxu0 0.0
        %960 = vmatprep.subr.mxu0 0.0
        %961 = vmatpush1.msra.mxu0 0.0
        %962 = vmatprep.subr.mxu0 0.0
        %963 = vmatpush1.msra.mxu0 0.0
        %964 = vmatprep.subr.mxu0 0.0
        %965 = vmatpush1.msra.mxu0 0.0
        %966 = vmatprep.subr.mxu0 0.0
        %967 = vmatpush1.msra.mxu0 0.0
        %968 = vmatprep.subr.mxu0 0.0
        %969 = vmatpush1.msra.mxu0 0.0
        %970 = vmatprep.subr.mxu0 0.0
        %971 = vmatpush1.msra.mxu0 0.0
        %972 = vmatprep.subr.mxu0 0.0
        %973 = vmatpush1.msra.mxu0 0.0
        %974 = vmatprep.subr.mxu0 0.0
        %975 = vmatpush1.msra.mxu0 0.0
        %976 = vmatprep.subr.mxu0 0.0
        %977 = vmatpush1.msra.mxu0 0.0
        %978 = vmatprep.subr.mxu0 0.0
        %979 = vmatpush1.msra.mxu0 0.0
        %980 = vmatprep.subr.mxu0 0.0
        %981 = vmatpush1.msra.mxu0 0.0
        %982 = vmatprep.subr.mxu0 0.0
        %983 = vmatpush1.msra.mxu0 0.0
        %984 = vmatprep.subr.mxu0 0.0
        %985 = vmatpush1.msra.mxu0 0.0
        %986 = vmatprep.subr.mxu0 0.0
        %987 = vmatpush1.msra.mxu0 0.0
        %988 = vmatprep.subr.mxu0 0.0
        %989 = vmatpush1.msra.mxu0 %v953
        %990 = vmatprep.subr.mxu0 0.0
        %991 = vmatpush2.msra.mxu0 0.0
        %992 = vmatprep.subr.mxu0 0.0
        %993 = vmatpush2.msra.mxu0 0.0
        %994 = vmatprep.subr.mxu0 0.0
        %995 = vmatpush2.msra.mxu0 0.0
        %996 = vmatprep.subr.mxu0 0.0
        %997 = vmatpush2.msra.mxu0 0.0
        %998 = vmatprep.subr.mxu0 0.0
        %999 = vmatpush2.msra.mxu0 0.0
        %1000 = vmatprep.subr.mxu0 0.0
        %1001 = vmatpush2.msra.mxu0 0.0
        %1002 = vmatprep.subr.mxu0 0.0
        %1003 = vmatpush2.msra.mxu0 0.0
        %1004 = vmatprep.subr.mxu0 0.0
        %1005 = vmatpush2.msra.mxu0 0.0
        %1006 = vmatprep.subr.mxu0 0.0
        %1007 = vmatpush2.msra.mxu0 0.0
        %1008 = vmatprep.subr.mxu0 0.0
        %1009 = vmatpush2.msra.mxu0 0.0
        %1010 = vmatprep.subr.mxu0 0.0
        %1011 = vmatpush2.msra.mxu0 0.0
        %1012 = vmatprep.subr.mxu0 0.0
        %1013 = vmatpush2.msra.mxu0 0.0
        %1014 = vmatprep.subr.mxu0 0.0
        %1015 = vmatpush2.msra.mxu0 0.0
        %1016 = vmatprep.subr.mxu0 0.0
        %1017 = vmatpush2.msra.mxu0 0.0
        %1018 = vmatprep.subr.mxu0 0.0
        %1019 = vmatpush2.msra.mxu0 0.0
        %1020 = vmatprep.subr.mxu0 0.0
        %1021 = vmatpush2.msra.mxu0 0.0
        %1022 = vmatprep.mubr.f32.mxu0 0.0
        %1023 = vmatmul.mubr.f32.gmra.mxu0 %v956
        %v1024 = vpop.f32.mrf.mxu0
        %v1025 = vadd.f32 0.0, %v1024
        %v1026 = vpop.f32.mrf.mxu0
        %1027 = vdwg.mxu0
        %v1028 = vld [vmem:[%s736] sm:$0xff]
        %v1029 = vld [vmem:[%s736 + $0x8] sm:$0xff]
        %v1030 = vld [vmem:[%s736 + $0x10] sm:$0xff]
        %v1031 = vld [vmem:[%s736 + $0x18] sm:$0xff]
        %v1032 = vld [vmem:[%s739] sm:$0x1]
        %v1034 = vlaneseq
        %v1035 = vshrl.u32 %v1034, 7
        %v1036 = vsub.s32 0, %v1035
        %v1037 = vrot.slane %v1032, %v1036
        %v1040 = vsel %vm789, %v1025, 0
        %1042 = vmatprep.subr.mxu0 0.0
        %1043 = vmatpush1.msra.mxu0 0.0
        %1044 = vmatprep.subr.mxu0 0.0
        %1045 = vmatpush1.msra.mxu0 0.0
        %1046 = vmatprep.subr.mxu0 0.0
        %1047 = vmatpush1.msra.mxu0 0.0
        %1048 = vmatprep.subr.mxu0 0.0
        %1049 = vmatpush1.msra.mxu0 0.0
        %1050 = vmatprep.subr.mxu0 0.0
        %1051 = vmatpush1.msra.mxu0 0.0
        %1052 = vmatprep.subr.mxu0 0.0
        %1053 = vmatpush1.msra.mxu0 0.0
        %1054 = vmatprep.subr.mxu0 0.0
        %1055 = vmatpush1.msra.mxu0 0.0
        %1056 = vmatprep.subr.mxu0 0.0
        %1057 = vmatpush1.msra.mxu0 0.0
        %1058 = vmatprep.subr.mxu0 0.0
        %1059 = vmatpush1.msra.mxu0 0.0
        %1060 = vmatprep.subr.mxu0 0.0
        %1061 = vmatpush1.msra.mxu0 0.0
        %1062 = vmatprep.subr.mxu0 0.0
        %1063 = vmatpush1.msra.mxu0 0.0
        %1064 = vmatprep.subr.mxu0 0.0
        %1065 = vmatpush1.msra.mxu0 0.0
        %1066 = vmatprep.subr.mxu0 0.0
        %1067 = vmatpush1.msra.mxu0 %v1031
        %1068 = vmatprep.subr.mxu0 0.0
        %1069 = vmatpush1.msra.mxu0 %v1030
        %1070 = vmatprep.subr.mxu0 0.0
        %1071 = vmatpush1.msra.mxu0 %v1029
        %1072 = vmatprep.subr.mxu0 0.0
        %1073 = vmatpush1.msra.mxu0 %v1028
        %1074 = vmatprep.subr.mxu0 0.0
        %1075 = vmatpush2.msra.mxu0 0.0
        %1076 = vmatprep.subr.mxu0 0.0
        %1077 = vmatpush2.msra.mxu0 0.0
        %1078 = vmatprep.subr.mxu0 0.0
        %1079 = vmatpush2.msra.mxu0 0.0
        %1080 = vmatprep.subr.mxu0 0.0
        %1081 = vmatpush2.msra.mxu0 0.0
        %1082 = vmatprep.subr.mxu0 0.0
        %1083 = vmatpush2.msra.mxu0 0.0
        %1084 = vmatprep.subr.mxu0 0.0
        %1085 = vmatpush2.msra.mxu0 0.0
        %1086 = vmatprep.subr.mxu0 0.0
        %1087 = vmatpush2.msra.mxu0 0.0
        %1088 = vmatprep.subr.mxu0 0.0
        %1089 = vmatpush2.msra.mxu0 0.0
        %1090 = vmatprep.subr.mxu0 0.0
        %1091 = vmatpush2.msra.mxu0 0.0
        %1092 = vmatprep.subr.mxu0 0.0
        %1093 = vmatpush2.msra.mxu0 0.0
        %1094 = vmatprep.subr.mxu0 0.0
        %1095 = vmatpush2.msra.mxu0 0.0
        %1096 = vmatprep.subr.mxu0 0.0
        %1097 = vmatpush2.msra.mxu0 0.0
        %1098 = vmatprep.subr.mxu0 0.0
        %1099 = vmatpush2.msra.mxu0 0.0
        %1100 = vmatprep.subr.mxu0 0.0
        %1101 = vmatpush2.msra.mxu0 0.0
        %1102 = vmatprep.subr.mxu0 0.0
        %1103 = vmatpush2.msra.mxu0 0.0
        %1104 = vmatprep.subr.mxu0 0.0
        %1105 = vmatpush2.msra.mxu0 0.0
        %1106 = vmatprep.mubr.f32.mxu0 0.0
        %1107 = vmatmul.mubr.f32.gmra.mxu0 %v1040
        %v1108 = vpop.f32.mrf.mxu0
        %v1109 = vadd.f32 %v1037, %v1108
        %v1110 = vpop.f32.mrf.mxu0
        %1111 = vdwg.mxu0
        %v1112 = vadd.f32 %v777, %v1109
        %v1113 = vld [vmem:[%s742] sm:$0x1]
        %v1114 = vld [vmem:[%s745] sm:$0x1]
        %v1115 = vsel %vm789, %v1112, 0.0
        %1116 = vadd.xlane.f32.xlu0 %v1115
        %v1117 = vpop.xlane.xlu0 %1116
        %v1118 = vrcp.pop 32.0
        %v1119 = vmul.f32 %v1117, %v1118
        %v1120 = vsub.f32 %v1112, %v1119
        %v1121 = vmul.f32 %v1120, %v1120
        %v1122 = vsel %vm789, %v1121, 0.0
        %1123 = vadd.xlane.f32.xlu0 %v1122
        %v1124 = vpop.xlane.xlu0 %1123
        %v1125 = vmul.f32 %v1124, %v1118
        %v1126 = vadd.f32 %v1125, 1e-05
        %v1127 = vrsqrt.pop %v1126
        %v1128 = vmul.f32 %v1120, %v1127
        %v1130 = vlaneseq
        %v1131 = vshrl.u32 %v1130, 7
        %v1132 = vsub.s32 0, %v1131
        %v1133 = vrot.slane %v1113, %v1132
        %v1135 = vmul.f32 %v1128, %v1133
        %v1137 = vlaneseq
        %v1138 = vshrl.u32 %v1137, 7
        %v1139 = vsub.s32 0, %v1138
        %v1140 = vrot.slane %v1114, %v1139
        %v1142 = vadd.f32 %v1135, %v1140
        %v1143 = vld [vmem:[%s750] sm:$0xff]
        %v1144 = vld [vmem:[%s750 + $0x8] sm:$0xff]
        %v1145 = vld [vmem:[%s750 + $0x10] sm:$0xff]
        %v1146 = vld [vmem:[%s750 + $0x18] sm:$0xff]
        %v1147 = vld [vmem:[%s753] sm:$0x1]
        %v1149 = vlaneseq
        %v1150 = vshrl.u32 %v1149, 7
        %v1151 = vsub.s32 0, %v1150
        %v1152 = vrot.slane %v1147, %v1151
        %v1155 = vsel %vm789, %v1142, 0
        %1157 = vmatprep.subr.mxu0 0.0
        %1158 = vmatpush1.msra.mxu0 0.0
        %1159 = vmatprep.subr.mxu0 0.0
        %1160 = vmatpush1.msra.mxu0 0.0
        %1161 = vmatprep.subr.mxu0 0.0
        %1162 = vmatpush1.msra.mxu0 0.0
        %1163 = vmatprep.subr.mxu0 0.0
        %1164 = vmatpush1.msra.mxu0 0.0
        %1165 = vmatprep.subr.mxu0 0.0
        %1166 = vmatpush1.msra.mxu0 0.0
        %1167 = vmatprep.subr.mxu0 0.0
        %1168 = vmatpush1.msra.mxu0 0.0
        %1169 = vmatprep.subr.mxu0 0.0
        %1170 = vmatpush1.msra.mxu0 0.0
        %1171 = vmatprep.subr.mxu0 0.0
        %1172 = vmatpush1.msra.mxu0 0.0
        %1173 = vmatprep.subr.mxu0 0.0
        %1174 = vmatpush1.msra.mxu0 0.0
        %1175 = vmatprep.subr.mxu0 0.0
        %1176 = vmatpush1.msra.mxu0 0.0
        %1177 = vmatprep.subr.mxu0 0.0
        %1178 = vmatpush1.msra.mxu0 0.0
        %1179 = vmatprep.subr.mxu0 0.0
        %1180 = vmatpush1.msra.mxu0 0.0
        %1181 = vmatprep.subr.mxu0 0.0
        %1182 = vmatpush1.msra.mxu0 %v1146
        %1183 = vmatprep.subr.mxu0 0.0
        %1184 = vmatpush1.msra.mxu0 %v1145
        %1185 = vmatprep.subr.mxu0 0.0
        %1186 = vmatpush1.msra.mxu0 %v1144
        %1187 = vmatprep.subr.mxu0 0.0
        %1188 = vmatpush1.msra.mxu0 %v1143
        %1189 = vmatprep.subr.mxu0 0.0
        %1190 = vmatpush2.msra.mxu0 0.0
        %1191 = vmatprep.subr.mxu0 0.0
        %1192 = vmatpush2.msra.mxu0 0.0
        %1193 = vmatprep.subr.mxu0 0.0
        %1194 = vmatpush2.msra.mxu0 0.0
        %1195 = vmatprep.subr.mxu0 0.0
        %1196 = vmatpush2.msra.mxu0 0.0
        %1197 = vmatprep.subr.mxu0 0.0
        %1198 = vmatpush2.msra.mxu0 0.0
        %1199 = vmatprep.subr.mxu0 0.0
        %1200 = vmatpush2.msra.mxu0 0.0
        %1201 = vmatprep.subr.mxu0 0.0
        %1202 = vmatpush2.msra.mxu0 0.0
        %1203 = vmatprep.subr.mxu0 0.0
        %1204 = vmatpush2.msra.mxu0 0.0
        %1205 = vmatprep.subr.mxu0 0.0
        %1206 = vmatpush2.msra.mxu0 0.0
        %1207 = vmatprep.subr.mxu0 0.0
        %1208 = vmatpush2.msra.mxu0 0.0
        %1209 = vmatprep.subr.mxu0 0.0
        %1210 = vmatpush2.msra.mxu0 0.0
        %1211 = vmatprep.subr.mxu0 0.0
        %1212 = vmatpush2.msra.mxu0 0.0
        %1213 = vmatprep.subr.mxu0 0.0
        %1214 = vmatpush2.msra.mxu0 0.0
        %1215 = vmatprep.subr.mxu0 0.0
        %1216 = vmatpush2.msra.mxu0 0.0
        %1217 = vmatprep.subr.mxu0 0.0
        %1218 = vmatpush2.msra.mxu0 0.0
        %1219 = vmatprep.subr.mxu0 0.0
        %1220 = vmatpush2.msra.mxu0 0.0
        %1221 = vmatprep.mubr.f32.mxu0 0.0
        %1222 = vmatmul.mubr.f32.gmra.mxu0 %v1155
        %v1223 = vpop.f32.mrf.mxu0
        %v1224 = vadd.f32 %v1152, %v1223
        %v1225 = vpop.f32.mrf.mxu0
        %1226 = vdwg.mxu0
        %v1227 = vmax.f32 %v1224, 0.0
        %v1228 = vld [vmem:[%s758] sm:$0xff]
        %v1229 = vld [vmem:[%s758 + $0x8] sm:$0xff]
        %v1230 = vld [vmem:[%s758 + $0x10] sm:$0xff]
        %v1231 = vld [vmem:[%s758 + $0x18] sm:$0xff]
        %v1232 = vld [vmem:[%s758 + $0x20] sm:$0xff]
        %v1233 = vld [vmem:[%s758 + $0x28] sm:$0xff]
        %v1234 = vld [vmem:[%s758 + $0x30] sm:$0xff]
        %v1235 = vld [vmem:[%s758 + $0x38] sm:$0xff]
        %v1236 = vld [vmem:[%s761] sm:$0x1]
        %v1238 = vlaneseq
        %v1239 = vshrl.u32 %v1238, 7
        %v1240 = vsub.s32 0, %v1239
        %v1241 = vrot.slane %v1236, %v1240
        %vm1243 = vcmask 523264
        %v1245 = vsel %vm1243, %v1227, 0
        %1247 = vmatprep.subr.mxu0 0.0
        %1248 = vmatpush1.msra.mxu0 0.0
        %1249 = vmatprep.subr.mxu0 0.0
        %1250 = vmatpush1.msra.mxu0 0.0
        %1251 = vmatprep.subr.mxu0 0.0
        %1252 = vmatpush1.msra.mxu0 0.0
        %1253 = vmatprep.subr.mxu0 0.0
        %1254 = vmatpush1.msra.mxu0 0.0
        %1255 = vmatprep.subr.mxu0 0.0
        %1256 = vmatpush1.msra.mxu0 0.0
        %1257 = vmatprep.subr.mxu0 0.0
        %1258 = vmatpush1.msra.mxu0 0.0
        %1259 = vmatprep.subr.mxu0 0.0
        %1260 = vmatpush1.msra.mxu0 0.0
        %1261 = vmatprep.subr.mxu0 0.0
        %1262 = vmatpush1.msra.mxu0 0.0
        %1263 = vmatprep.subr.mxu0 0.0
        %1264 = vmatpush1.msra.mxu0 %v1235
        %1265 = vmatprep.subr.mxu0 0.0
        %1266 = vmatpush1.msra.mxu0 %v1234
        %1267 = vmatprep.subr.mxu0 0.0
        %1268 = vmatpush1.msra.mxu0 %v1233
        %1269 = vmatprep.subr.mxu0 0.0
        %1270 = vmatpush1.msra.mxu0 %v1232
        %1271 = vmatprep.subr.mxu0 0.0
        %1272 = vmatpush1.msra.mxu0 %v1231
        %1273 = vmatprep.subr.mxu0 0.0
        %1274 = vmatpush1.msra.mxu0 %v1230
        %1275 = vmatprep.subr.mxu0 0.0
        %1276 = vmatpush1.msra.mxu0 %v1229
        %1277 = vmatprep.subr.mxu0 0.0
        %1278 = vmatpush1.msra.mxu0 %v1228
        %1279 = vmatprep.subr.mxu0 0.0
        %1280 = vmatpush2.msra.mxu0 0.0
        %1281 = vmatprep.subr.mxu0 0.0
        %1282 = vmatpush2.msra.mxu0 0.0
        %1283 = vmatprep.subr.mxu0 0.0
        %1284 = vmatpush2.msra.mxu0 0.0
        %1285 = vmatprep.subr.mxu0 0.0
        %1286 = vmatpush2.msra.mxu0 0.0
        %1287 = vmatprep.subr.mxu0 0.0
        %1288 = vmatpush2.msra.mxu0 0.0
        %1289 = vmatprep.subr.mxu0 0.0
        %1290 = vmatpush2.msra.mxu0 0.0
        %1291 = vmatprep.subr.mxu0 0.0
        %1292 = vmatpush2.msra.mxu0 0.0
        %1293 = vmatprep.subr.mxu0 0.0
        %1294 = vmatpush2.msra.mxu0 0.0
        %1295 = vmatprep.subr.mxu0 0.0
        %1296 = vmatpush2.msra.mxu0 0.0
        %1297 = vmatprep.subr.mxu0 0.0
        %1298 = vmatpush2.msra.mxu0 0.0
        %1299 = vmatprep.subr.mxu0 0.0
        %1300 = vmatpush2.msra.mxu0 0.0
        %1301 = vmatprep.subr.mxu0 0.0
        %1302 = vmatpush2.msra.mxu0 0.0
        %1303 = vmatprep.subr.mxu0 0.0
        %1304 = vmatpush2.msra.mxu0 0.0
        %1305 = vmatprep.subr.mxu0 0.0
        %1306 = vmatpush2.msra.mxu0 0.0
        %1307 = vmatprep.subr.mxu0 0.0
        %1308 = vmatpush2.msra.mxu0 0.0
        %1309 = vmatprep.subr.mxu0 0.0
        %1310 = vmatpush2.msra.mxu0 0.0
        %1311 = vmatprep.mubr.f32.mxu0 0.0
        %1312 = vmatmul.mubr.f32.gmra.mxu0 %v1245
        %v1313 = vpop.f32.mrf.mxu0
        %v1314 = vadd.f32 %v1241, %v1313
        %v1315 = vpop.f32.mrf.mxu0
        %1316 = vdwg.mxu0
        %v1317 = vadd.f32 %v1142, %v1314
        %v1318 = vld [vmem:[%s764] sm:$0x1]
        %v1319 = vld [vmem:[%s767] sm:$0x1]
        %v1320 = vsel %vm789, %v1317, 0.0
        %1321 = vadd.xlane.f32.xlu0 %v1320
        %v1322 = vpop.xlane.xlu0 %1321
        %v1323 = vmul.f32 %v1322, %v1118
        %v1324 = vsub.f32 %v1317, %v1323
        %v1325 = vmul.f32 %v1324, %v1324
        %v1326 = vsel %vm789, %v1325, 0.0
        %1327 = vadd.xlane.f32.xlu0 %v1326
        %v1328 = vpop.xlane.xlu0 %1327
        %v1329 = vmul.f32 %v1328, %v1118
        %v1330 = vadd.f32 %v1329, 1e-05
        %v1331 = vrsqrt.pop %v1330
        %v1332 = vmul.f32 %v1324, %v1331
        %v1334 = vlaneseq
        %v1335 = vshrl.u32 %v1334, 7
        %v1336 = vsub.s32 0, %v1335
        %v1337 = vrot.slane %v1318, %v1336
        %v1339 = vmul.f32 %v1332, %v1337
        %v1341 = vlaneseq
        %v1342 = vshrl.u32 %v1341, 7
        %v1343 = vsub.s32 0, %v1342
        %v1344 = vrot.slane %v1319, %v1343
        %v1346 = vadd.f32 %v1339, %v1344
        %1347 = vst.msk [vmem:[#allocation2] sm:$0xff] %vm789, %v1346
        %p1348 = scmp.eq.s32.totalorder %s39, 1
        // Predicated region
        $region101: #{tpu_custom_call.1} parent=83 // pred_check
          %p1349 = pneg %p1348
        $region102: #{tpu_custom_call.1} parent=83 // pred_check_branch
          %1351 = sbr.rel (%p1349) target = $region104
        $region103: #{tpu_custom_call.1} parent=83 // pred_region
          %v1352 = vld [vmem:[#allocation8] sm:$0xff]
          %v1353 = vld [vmem:[#allocation8 + $0x8] sm:$0xff]
          %v1354 = vld [vmem:[#allocation8 + $0x10] sm:$0xff]
          %v1355 = vld [vmem:[#allocation8 + $0x18] sm:$0xff]
          %v1356 = vld [vmem:[%s15] sm:$0x1]
          %v1358 = vlaneseq
          %v1359 = vshrl.u32 %v1358, 7
          %v1360 = vsub.s32 0, %v1359
          %v1361 = vrot.slane %v1356, %v1360
          %v1364 = vsel %vm789, %v1346, 0
          %1366 = vmatprep.subr.mxu0 0.0
          %1367 = vmatpush1.msra.mxu0 0.0
          %1368 = vmatprep.subr.mxu0 0.0
          %1369 = vmatpush1.msra.mxu0 0.0
          %1370 = vmatprep.subr.mxu0 0.0
          %1371 = vmatpush1.msra.mxu0 0.0
          %1372 = vmatprep.subr.mxu0 0.0
          %1373 = vmatpush1.msra.mxu0 0.0
          %1374 = vmatprep.subr.mxu0 0.0
          %1375 = vmatpush1.msra.mxu0 0.0
          %1376 = vmatprep.subr.mxu0 0.0
          %1377 = vmatpush1.msra.mxu0 0.0
          %1378 = vmatprep.subr.mxu0 0.0
          %1379 = vmatpush1.msra.mxu0 0.0
          %1380 = vmatprep.subr.mxu0 0.0
          %1381 = vmatpush1.msra.mxu0 0.0
          %1382 = vmatprep.subr.mxu0 0.0
          %1383 = vmatpush1.msra.mxu0 0.0
          %1384 = vmatprep.subr.mxu0 0.0
          %1385 = vmatpush1.msra.mxu0 0.0
          %1386 = vmatprep.subr.mxu0 0.0
          %1387 = vmatpush1.msra.mxu0 0.0
          %1388 = vmatprep.subr.mxu0 0.0
          %1389 = vmatpush1.msra.mxu0 0.0
          %1390 = vmatprep.subr.mxu0 0.0
          %1391 = vmatpush1.msra.mxu0 %v1355
          %1392 = vmatprep.subr.mxu0 0.0
          %1393 = vmatpush1.msra.mxu0 %v1354
          %1394 = vmatprep.subr.mxu0 0.0
          %1395 = vmatpush1.msra.mxu0 %v1353
          %1396 = vmatprep.subr.mxu0 0.0
          %1397 = vmatpush1.msra.mxu0 %v1352
          %1398 = vmatprep.subr.mxu0 0.0
          %1399 = vmatpush2.msra.mxu0 0.0
          %1400 = vmatprep.subr.mxu0 0.0
          %1401 = vmatpush2.msra.mxu0 0.0
          %1402 = vmatprep.subr.mxu0 0.0
          %1403 = vmatpush2.msra.mxu0 0.0
          %1404 = vmatprep.subr.mxu0 0.0
          %1405 = vmatpush2.msra.mxu0 0.0
          %1406 = vmatprep.subr.mxu0 0.0
          %1407 = vmatpush2.msra.mxu0 0.0
          %1408 = vmatprep.subr.mxu0 0.0
          %1409 = vmatpush2.msra.mxu0 0.0
          %1410 = vmatprep.subr.mxu0 0.0
          %1411 = vmatpush2.msra.mxu0 0.0
          %1412 = vmatprep.subr.mxu0 0.0
          %1413 = vmatpush2.msra.mxu0 0.0
          %1414 = vmatprep.subr.mxu0 0.0
          %1415 = vmatpush2.msra.mxu0 0.0
          %1416 = vmatprep.subr.mxu0 0.0
          %1417 = vmatpush2.msra.mxu0 0.0
          %1418 = vmatprep.subr.mxu0 0.0
          %1419 = vmatpush2.msra.mxu0 0.0
          %1420 = vmatprep.subr.mxu0 0.0
          %1421 = vmatpush2.msra.mxu0 0.0
          %1422 = vmatprep.subr.mxu0 0.0
          %1423 = vmatpush2.msra.mxu0 0.0
          %1424 = vmatprep.subr.mxu0 0.0
          %1425 = vmatpush2.msra.mxu0 0.0
          %1426 = vmatprep.subr.mxu0 0.0
          %1427 = vmatpush2.msra.mxu0 0.0
          %1428 = vmatprep.subr.mxu0 0.0
          %1429 = vmatpush2.msra.mxu0 0.0
          %1430 = vmatprep.mubr.f32.mxu0 0.0
          %1431 = vmatmul.mubr.f32.gmra.mxu0 %v1364
          %v1432 = vpop.f32.mrf.mxu0
          %v1433 = vadd.f32 %v1361, %v1432
          %v1434 = vpop.f32.mrf.mxu0
          %1435 = vdwg.mxu0
          %1436 = vst [vmem:[%s723] sm:$0xff] %v1433
        $region104: #{tpu_custom_call.1} parent=83 // pred_fallthru
          _
        %s1437 = sand.u32 %s455, 1
        %s1438 = scalar_lea.sflag [#allocation5], %s1437
        %s1439 = sand.u32 %s455, 1
        %s1440 = smul.addr %s1439, 8
        %s1441 = scalar_lea.vmem [#allocation9], %s1440
        // Predicated region
        $region105: #{tpu_custom_call.1} parent=83 // pred_check
          %p1442 = pneg %p465
        $region106: #{tpu_custom_call.1} parent=83 // pred_check_branch
          %1444 = sbr.rel (%p1442) target = $region108
        $region107: #{tpu_custom_call.1} parent=83 // pred_region
          %s1446 = ssub.s32 128, 128
          %1447 = vsyncadd %s1438, %s1446
          %s1448 = smul.addr %s38, 128
          %s1449 = scalar_lea.hbm %s16, %s1448
          %s1451 = sshll.u32 %s1441, 4
          %s1452 = int_to_ptr.vmem [resolvable:$true] %s1451
          %1454 = dma.vmem_to_hbm [thread:$0]  %s1452, 128, %s1449, %s1438
        $region108: #{tpu_custom_call.1} parent=83 // pred_fallthru
          _
      $region84: #{tpu_custom_call.1} parent=5 // pred_fallthru
        _
      %p1455 = scmp.le.s32.totalorder 2, %s29
      // Predicated region
      $region109: #{tpu_custom_call.1} parent=5 // pred_check
        %p1456 = pneg %p1455
      $region110: #{tpu_custom_call.1} parent=5 // pred_check_branch
        %1458 = sbr.rel (%p1456) target = $region112
      $region111: #{tpu_custom_call.1} parent=5 // pred_region
        %s1459 = ssub.s32 %s29, 2
        // Predicated region
        $region113: #{tpu_custom_call.1} parent=111 // pred_check
          %p1460 = pneg %p471
        $region114: #{tpu_custom_call.1} parent=111 // pred_check_branch
          %1462 = sbr.rel (%p1460) target = $region116
        $region115: #{tpu_custom_call.1} parent=111 // pred_region
          %s1463 = sand.u32 %s456, 1
          %s1464 = scalar_lea.sflag [#allocation5], %s1463
          %s1465 = sand.u32 %s456, 1
          %s1466 = smul.addr %s1465, 8
          %s1467 = scalar_lea.vmem [#allocation9], %s1466
          %1468 = dma.done %s1464, 128
        $region116: #{tpu_custom_call.1} parent=111 // pred_fallthru
          _
      $region112: #{tpu_custom_call.1} parent=5 // pred_fallthru
        _
    $region6: #{tpu_custom_call.1} parent=1 // loop_footer
      %s33 = sadd.s32 1, %s29
    $region7: #{tpu_custom_call.1} parent=1 // loop_footer_branch
      %28 = sbr.rel target = $region3
    $region8: #{tpu_custom_call.1} parent=1 // loop_exit
      _
    %1469 = vsyncpa [#allocation4], 1
    %s1470 = scalar_lea.sflag [#allocation4], 1
    %1471 = vsyncpa %s1470, 1
    %1472 = vsyncpa [#allocation7], 1
    %1473 = vsyncpa [#allocation5], 1
    %s1474 = scalar_lea.sflag [#allocation5], 1
    %1475 = vsyncpa %s1474, 1

</llo_original>
